<compile_context>
chip_gen: v7x
topology: tpu7x:2x2x1
jax: 0.10.0
libtpu: 0.0.40
codegen_flags: <defaults>
</compile_context>

<pallas_src>
import math
import numpy as np
import jax
import jax.numpy as jnp
from jax import lax
from jax.experimental import pallas as pl
from jax.experimental.pallas import tpu as pltpu


# ----------------------------------------------------------------- helpers ---

def _round_up(x, mult):
    return (x + mult - 1) // mult * mult


def _batch_tile(B):
    # Prefer a tile that is a multiple of 8 (sublane granularity), divides B
    # exactly, and yields >= 2 grid steps (so v7x megacore gets work).
    for tb in (256, 128, 64, 32, 16, 8):
        if B % tb == 0 and tb < B:
            return tb
    return B


def _firm_thr(x, theta, gam):
    """Firm-threshold nonlinearity (elementwise, VPU)."""
    T = theta * gam
    relu = lambda a: jnp.maximum(a, 0.0)
    c1 = 1.0 / (gam - 1.0)
    c2 = gam / (gam - 1.0)
    return (c1 * relu(-x - T) - c2 * relu(-x - theta)
            + c2 * relu(x - theta) - c1 * relu(x - T))


# ------------------------------------------------------------------ kernel ---

def _make_kernel(num_iter, tb, n_pad, unroll_limit):
    # Kernel args: scalars (SMEM), y, SDt, D, WtDt  ->  x (all iterates).
    #   scalars = [thr, gam, coef_0, ..., coef_{num_iter-1}]
    def kernel(sc_ref, y_ref, SDt_ref, D_ref, WtDt_ref, x_ref):
        theta = sc_ref[0]
        gam = sc_ref[1]

        y = y_ref[...]                       # (tb, m)
        SDt = SDt_ref[...]                   # (n_pad, p_pad)  == (S.T @ D.T) padded
        Dp = D_ref[...]                      # (p_pad, n_pad)
        # Iteration-invariant term  y @ W.T @ D.T  (hoisted out of the loop).
        WyD = jnp.dot(y, WtDt_ref[...], preferred_element_type=jnp.float32)

        d0 = jnp.zeros((tb, n_pad), jnp.float32)
        x_ref[0] = d0                        # x[0] = zeros, as in the torch code

        def step(coef, d, d_old):
            z = d + coef * (d - d_old)
            v = jnp.dot(z, SDt, preferred_element_type=jnp.float32) + WyD
            f = _firm_thr(v, theta, gam)
            return jnp.dot(f, Dp, preferred_element_type=jnp.float32)

        if num_iter <= unroll_limit:
            # Fully unrolled: static indices, full LLO scheduling visibility.
            d, d_old = d0, d0
            for it in range(num_iter):
                d_new = step(sc_ref[2 + it], d, d_old)
                d_old = d
                d = d_new
                x_ref[it + 1] = d
        else:
            # Rolled loop for large num_iter: one iteration of intermediates
            # stays live; coefs read from SMEM by step index.
            def body(it, carry):
                d, d_old = carry
                d_new = step(sc_ref[2 + it], d, d_old)
                x_ref[it + 1] = d_new
                return (d_new, d)
            lax.fori_loop(0, num_iter, body, (d0, d0))

    return kernel


# ----------------------------------------------------------------- wrapper ---

def rtf_fmcp_forward(y, S, W, D, thr, gam, num_iter, *, unroll_limit=16):
    """Fused forward of a_RTF_FMCP_model.

    Returns (x_list, time_list) with x_list = [d_0, d_1, ..., d_numIter],
    each of shape (B, n).
    """
    y = jnp.asarray(y, jnp.float32)
    S = jnp.asarray(S, jnp.float32)
    W = jnp.asarray(W, jnp.float32)
    D = jnp.asarray(D, jnp.float32)
    B, m = y.shape
    n = S.shape[0]
    p = D.shape[0]
    n_pad = _round_up(n, 128)
    p_pad = _round_up(p, 128)

    # One-time, loop-invariant weight preparation (outside the kernel):
    #   v = z @ (S.T @ D.T) + y @ (W.T @ D.T)   ;   d = firm_thr(v) @ D
    SDt = (D @ S).T                     # (n, p)
    WtDt = (D @ W).T                    # (m, p)
    # Zero-pad feature dims to multiples of 128 -> lane-dense matmuls/stores.
    SDt_p = jnp.zeros((n_pad, p_pad), jnp.float32).at[:n, :p].set(SDt)
    WtDt_p = jnp.zeros((m, p_pad), jnp.float32).at[:, :p].set(WtDt)
    D_p = jnp.zeros((p_pad, n_pad), jnp.float32).at[:p, :n].set(D)

    # FISTA momentum coefficients: pure scalar recurrence on the static step.
    coefs = np.zeros((num_iter,), np.float32)
    a1 = 1.0
    for it in range(num_iter):
        a0 = a1
        a1 = 0.5 + math.sqrt(1.0 + 4.0 * a0 * a0) / 2.0
        coefs[it] = (a0 - 1.0) / a1

    # Pack [thr, gam, coefs...] into a single SMEM scalar vector.
    # NOTE: gam == 1.0 would make firm_thr divide by zero (same as reference).
    scalars = jnp.concatenate([
        jnp.reshape(jnp.asarray(thr, jnp.float32), (-1,))[:1],
        jnp.reshape(jnp.asarray(gam, jnp.float32), (-1,))[:1],
        jnp.asarray(coefs),
    ]).astype(jnp.float32)

    tb = _batch_tile(B)
    grid = (B // tb,)

    kernel = _make_kernel(num_iter, tb, n_pad, unroll_limit)
    smem = pl.BlockSpec(memory_space=pltpu.MemorySpace.SMEM)

    flops = int(num_iter * 4 * B * n_pad * p_pad + 2 * B * m * p_pad)
    bytes_accessed = int(4 * (y.size + SDt_p.size + WtDt_p.size + D_p.size
                              + (num_iter + 1) * B * n_pad))

    out = pl.pallas_call(
        kernel,
        out_shape=jax.ShapeDtypeStruct((num_iter + 1, B, n_pad), jnp.float32),
        grid=grid,
        in_specs=[
            smem,                                              # packed scalars
            pl.BlockSpec((tb, m), lambda i: (i, 0)),           # y  (batch-tiled)
            pl.BlockSpec((n_pad, p_pad), lambda i: (0, 0)),    # SDt (resident)
            pl.BlockSpec((p_pad, n_pad), lambda i: (0, 0)),    # D   (resident)
            pl.BlockSpec((m, p_pad), lambda i: (0, 0)),        # WtDt (resident)
        ],
        out_specs=pl.BlockSpec((num_iter + 1, tb, n_pad), lambda i: (0, i, 0)),
        compiler_params=pltpu.CompilerParams(
            dimension_semantics=("parallel",)),
        cost_estimate=pl.CostEstimate(
            flops=flops, transcendentals=0, bytes_accessed=bytes_accessed),
    )(scalars, y, SDt_p, D_p, WtDt_p)

    x_full = out[:, :, :n]                 # drop lane padding
    x_list = [x_full[i] for i in range(num_iter + 1)]
    # TODO(synk): per-iteration host wall-clock time_list is not measurable
    # inside a fused device kernel; returned empty.
    time_list = []
    return x_list, time_list


# -------------------------------------------------------- reference (numpy) --

def _reference(y, S, W, D, thr, gam, num_iter):
    d = np.zeros((y.shape[0], S.shape[0]), np.float32)
    d_old = d
    xs = [d]
    a1 = 1.0
    for _ in range(num_iter):
        a0 = a1
        a1 = 0.5 + np.sqrt(1.0 + 4.0 * a0 ** 2) / 2.0
        z = d + (a0 - 1.0) / a1 * (d - d_old)
        d_old = d
        v = (z @ S.T + y @ W.T) @ D.T
        T = thr * gam
        relu = lambda a: np.maximum(a, 0.0)
        f = (1.0 / (gam - 1.0)) * relu(-v - T) - (gam / (gam - 1.0)) * relu(-v - thr) \
            + (gam / (gam - 1.0)) * relu(v - thr) - (1.0 / (gam - 1.0)) * relu(v - T)
        d = (f @ D).astype(np.float32)
        xs.append(d)
    return xs


# --------------------------------------------------------------------- main --

if __name__ == "__main__":
    # Small synthetic problem consistent with the module's __init__.
    m, n, p = 16, 32, 32
    batch = 8
    num_iter = 5
    thr_, gam_ = 0.1, 3.0

    key = jax.random.PRNGKey(0)
    k_a, k_d, k_y = jax.random.split(key, 3)
    A = np.asarray(jax.random.normal(k_a, (m, n), jnp.float32), dtype=np.float64)
    D2 = np.asarray(jax.random.normal(k_d, (p, n), jnp.float32), dtype=np.float64) / np.sqrt(n)
    y = jax.random.normal(k_y, (batch, m), jnp.float32)

    # ---- deterministic weights_init (same math as the torch module) ----
    Ainv = np.linalg.pinv(A)
    AinvA = Ainv @ A
    d_AinvA = np.linalg.inv(np.diag(np.diag(AinvA)))
    Ainv = d_AinvA @ Ainv
    alpha = np.linalg.norm(Ainv @ A, 2) * 1.001
    S_np = (np.eye(n) - (1.0 / alpha) * (Ainv @ A)).astype(np.float32)
    W_np = ((1.0 / alpha) * Ainv).astype(np.float32)
    D_np = D2.astype(np.float32)
    thr_np = np.full((1, 1), thr_ / alpha, dtype=np.float32)
    gam_np = np.full((1, 1), gam_, dtype=np.float32)

    S = jnp.asarray(S_np)
    W = jnp.asarray(W_np)
    D = jnp.asarray(D_np)
    thr = jnp.asarray(thr_np)
    gam = jnp.asarray(gam_np)

    ref = _reference(np.asarray(y), S_np, W_np, D_np,
                     float(thr_np[0, 0]), float(gam_np[0, 0]), num_iter)

    # (1) fully-unrolled in-kernel loop path
    x_list, _ = rtf_fmcp_forward(y, S, W, D, thr, gam, num_iter)
    jax.block_until_ready(x_list)
    for got, want in zip(x_list, ref):
        np.testing.assert_allclose(np.asarray(got), want, rtol=1e-3, atol=1e-3)

    # (2) rolled lax.fori_loop path (same semantics, exercised by forcing it)
    x_list2, _ = rtf_fmcp_forward(y, S, W, D, thr, gam, num_iter, unroll_limit=0)
    jax.block_until_ready(x_list2)
    for got, want in zip(x_list2, ref):
        np.testing.assert_allclose(np.asarray(got), want, rtol=1e-3, atol=1e-3)

    print("KERNEL_OK")
</pallas_src>

<mosaic_0001>
module attributes {stable_mosaic.version = 11 : i64} {
  func.func @kernel(%arg0: i32, %arg1: memref<7xf32, #tpu.memory_space<smem>>, %arg2: memref<8x16xf32, #tpu.memory_space<vmem>>, %arg3: memref<128x128xf32, #tpu.memory_space<vmem>>, %arg4: memref<128x128xf32, #tpu.memory_space<vmem>>, %arg5: memref<16x128xf32, #tpu.memory_space<vmem>>, %arg6: memref<6x8x128xf32, #tpu.memory_space<vmem>>) attributes {dimension_semantics = [#tpu.dimension_semantics<parallel>], iteration_bounds = array<i64: 1>, scalar_prefetch = 0 : i64, scratch_operands = 0 : i64, tpu.core_type = #tpu.core_type<tc>, window_params = [{transform_indices = @transform_0, window_bounds = array<i64: 7>}, {transform_indices = @transform_1, window_bounds = array<i64: 8, 16>}, {pipeline_mode = #tpu.pipeline_mode<synchronous>, transform_indices = @transform_2, window_bounds = array<i64: 128, 128>}, {pipeline_mode = #tpu.pipeline_mode<synchronous>, transform_indices = @transform_3, window_bounds = array<i64: 128, 128>}, {pipeline_mode = #tpu.pipeline_mode<synchronous>, transform_indices = @transform_4, window_bounds = array<i64: 16, 128>}, {transform_indices = @transform_5, window_bounds = array<i64: 6, 8, 128>}]} {
    %c0 = arith.constant 0 : index
    %0 = memref.load %arg1[%c0] : memref<7xf32, #tpu.memory_space<smem>>
    %c1 = arith.constant 1 : index
    %1 = memref.load %arg1[%c1] : memref<7xf32, #tpu.memory_space<smem>>
    %c0_0 = arith.constant 0 : index
    %c0_1 = arith.constant 0 : index
    %2 = vector.load %arg2[%c0_0, %c0_1] : memref<8x16xf32, #tpu.memory_space<vmem>>, vector<8x16xf32>
    %c0_2 = arith.constant 0 : index
    %c0_3 = arith.constant 0 : index
    %3 = vector.load %arg3[%c0_2, %c0_3] : memref<128x128xf32, #tpu.memory_space<vmem>>, vector<128x128xf32>
    %c0_4 = arith.constant 0 : index
    %c0_5 = arith.constant 0 : index
    %4 = vector.load %arg4[%c0_4, %c0_5] : memref<128x128xf32, #tpu.memory_space<vmem>>, vector<128x128xf32>
    %c0_6 = arith.constant 0 : index
    %c0_7 = arith.constant 0 : index
    %5 = vector.load %arg5[%c0_6, %c0_7] : memref<16x128xf32, #tpu.memory_space<vmem>>, vector<16x128xf32>
    %cst = arith.constant dense<0.000000e+00> : vector<8x128xf32>
    %6 = tpu.matmul %2, %5, %cst {dimension_numbers = #tpu.dot_dimension_numbers<[1], [0], [0], [1], [0, 0, 1, 1], [], []>} : vector<8x16xf32>, vector<16x128xf32>, vector<8x128xf32> -> vector<8x128xf32>
    %cst_8 = arith.constant 0.000000e+00 : f32
    %7 = vector.broadcast %cst_8 : f32 to vector<8x128xf32>
    %c0_9 = arith.constant 0 : index
    %c0_10 = arith.constant 0 : index
    %c0_11 = arith.constant 0 : index
    %8 = vector.load %arg6[%c0_9, %c0_10, %c0_11] : memref<6x8x128xf32, #tpu.memory_space<vmem>>, vector<1x8x128xf32>
    %9 = vector.shape_cast %8 : vector<1x8x128xf32> to vector<8x128xf32>
    %10 = vector.shape_cast %7 : vector<8x128xf32> to vector<1x8x128xf32>
    tpu.vector_store %arg6[%c0_9, %c0_10, %c0_11], %10 {strides = array<i32>} : memref<6x8x128xf32, #tpu.memory_space<vmem>>, vector<1x8x128xf32>,
    %c2 = arith.constant 2 : index
    %11 = memref.load %arg1[%c2] : memref<7xf32, #tpu.memory_space<smem>>
    %12 = arith.subf %7, %7 : vector<8x128xf32>
    %13 = vector.broadcast %11 : f32 to vector<8x128xf32>
    %14 = arith.mulf %13, %12 : vector<8x128xf32>
    %15 = arith.addf %7, %14 : vector<8x128xf32>
    %cst_12 = arith.constant dense<0.000000e+00> : vector<8x128xf32>
    %16 = tpu.matmul %15, %3, %cst_12 {dimension_numbers = #tpu.dot_dimension_numbers<[1], [0], [0], [1], [0, 0, 1, 1], [], []>} : vector<8x128xf32>, vector<128x128xf32>, vector<8x128xf32> -> vector<8x128xf32>
    %17 = arith.addf %16, %6 : vector<8x128xf32>
    %18 = arith.mulf %0, %1 : f32
    %cst_13 = arith.constant 1.000000e+00 : f32
    %19 = arith.subf %1, %cst_13 : f32
    %cst_14 = arith.constant 1.000000e+00 : f32
    %20 = arith.divf %cst_14, %19 : f32
    %cst_15 = arith.constant 1.000000e+00 : f32
    %21 = arith.subf %1, %cst_15 : f32
    %22 = arith.divf %1, %21 : f32
    %cst_16 = arith.constant 0.000000e+00 : f32
    %23 = vector.broadcast %cst_16 : f32 to vector<8x128xf32>
    %24 = arith.subf %23, %17 : vector<8x128xf32>
    %25 = vector.broadcast %18 : f32 to vector<8x128xf32>
    %26 = arith.subf %24, %25 : vector<8x128xf32>
    %cst_17 = arith.constant 0.000000e+00 : f32
    %27 = vector.broadcast %cst_17 : f32 to vector<8x128xf32>
    %28 = arith.maximumf %26, %27 : vector<8x128xf32>
    %29 = vector.broadcast %20 : f32 to vector<8x128xf32>
    %30 = arith.mulf %29, %28 : vector<8x128xf32>
    %cst_18 = arith.constant 0.000000e+00 : f32
    %31 = vector.broadcast %cst_18 : f32 to vector<8x128xf32>
    %32 = arith.subf %31, %17 : vector<8x128xf32>
    %33 = vector.broadcast %0 : f32 to vector<8x128xf32>
    %34 = arith.subf %32, %33 : vector<8x128xf32>
    %cst_19 = arith.constant 0.000000e+00 : f32
    %35 = vector.broadcast %cst_19 : f32 to vector<8x128xf32>
    %36 = arith.maximumf %34, %35 : vector<8x128xf32>
    %37 = vector.broadcast %22 : f32 to vector<8x128xf32>
    %38 = arith.mulf %37, %36 : vector<8x128xf32>
    %39 = arith.subf %30, %38 : vector<8x128xf32>
    %40 = vector.broadcast %0 : f32 to vector<8x128xf32>
    %41 = arith.subf %17, %40 : vector<8x128xf32>
    %cst_20 = arith.constant 0.000000e+00 : f32
    %42 = vector.broadcast %cst_20 : f32 to vector<8x128xf32>
    %43 = arith.maximumf %41, %42 : vector<8x128xf32>
    %44 = vector.broadcast %22 : f32 to vector<8x128xf32>
    %45 = arith.mulf %44, %43 : vector<8x128xf32>
    %46 = arith.addf %39, %45 : vector<8x128xf32>
    %47 = vector.broadcast %18 : f32 to vector<8x128xf32>
    %48 = arith.subf %17, %47 : vector<8x128xf32>
    %cst_21 = arith.constant 0.000000e+00 : f32
    %49 = vector.broadcast %cst_21 : f32 to vector<8x128xf32>
    %50 = arith.maximumf %48, %49 : vector<8x128xf32>
    %51 = vector.broadcast %20 : f32 to vector<8x128xf32>
    %52 = arith.mulf %51, %50 : vector<8x128xf32>
    %53 = arith.subf %46, %52 : vector<8x128xf32>
    %cst_22 = arith.constant dense<0.000000e+00> : vector<8x128xf32>
    %54 = tpu.matmul %53, %4, %cst_22 {dimension_numbers = #tpu.dot_dimension_numbers<[1], [0], [0], [1], [0, 0, 1, 1], [], []>} : vector<8x128xf32>, vector<128x128xf32>, vector<8x128xf32> -> vector<8x128xf32>
    %c1_23 = arith.constant 1 : index
    %c0_24 = arith.constant 0 : index
    %c0_25 = arith.constant 0 : index
    %55 = vector.load %arg6[%c1_23, %c0_24, %c0_25] : memref<6x8x128xf32, #tpu.memory_space<vmem>>, vector<1x8x128xf32>
    %56 = vector.shape_cast %55 : vector<1x8x128xf32> to vector<8x128xf32>
    %57 = vector.shape_cast %54 : vector<8x128xf32> to vector<1x8x128xf32>
    tpu.vector_store %arg6[%c1_23, %c0_24, %c0_25], %57 {strides = array<i32>} : memref<6x8x128xf32, #tpu.memory_space<vmem>>, vector<1x8x128xf32>,
    %c3 = arith.constant 3 : index
    %58 = memref.load %arg1[%c3] : memref<7xf32, #tpu.memory_space<smem>>
    %59 = arith.subf %54, %7 : vector<8x128xf32>
    %60 = vector.broadcast %58 : f32 to vector<8x128xf32>
    %61 = arith.mulf %60, %59 : vector<8x128xf32>
    %62 = arith.addf %54, %61 : vector<8x128xf32>
    %cst_26 = arith.constant dense<0.000000e+00> : vector<8x128xf32>
    %63 = tpu.matmul %62, %3, %cst_26 {dimension_numbers = #tpu.dot_dimension_numbers<[1], [0], [0], [1], [0, 0, 1, 1], [], []>} : vector<8x128xf32>, vector<128x128xf32>, vector<8x128xf32> -> vector<8x128xf32>
    %64 = arith.addf %63, %6 : vector<8x128xf32>
    %65 = arith.mulf %0, %1 : f32
    %cst_27 = arith.constant 1.000000e+00 : f32
    %66 = arith.subf %1, %cst_27 : f32
    %cst_28 = arith.constant 1.000000e+00 : f32
    %67 = arith.divf %cst_28, %66 : f32
    %cst_29 = arith.constant 1.000000e+00 : f32
    %68 = arith.subf %1, %cst_29 : f32
    %69 = arith.divf %1, %68 : f32
    %cst_30 = arith.constant 0.000000e+00 : f32
    %70 = vector.broadcast %cst_30 : f32 to vector<8x128xf32>
    %71 = arith.subf %70, %64 : vector<8x128xf32>
    %72 = vector.broadcast %65 : f32 to vector<8x128xf32>
    %73 = arith.subf %71, %72 : vector<8x128xf32>
    %cst_31 = arith.constant 0.000000e+00 : f32
    %74 = vector.broadcast %cst_31 : f32 to vector<8x128xf32>
    %75 = arith.maximumf %73, %74 : vector<8x128xf32>
    %76 = vector.broadcast %67 : f32 to vector<8x128xf32>
    %77 = arith.mulf %76, %75 : vector<8x128xf32>
    %cst_32 = arith.constant 0.000000e+00 : f32
    %78 = vector.broadcast %cst_32 : f32 to vector<8x128xf32>
    %79 = arith.subf %78, %64 : vector<8x128xf32>
    %80 = vector.broadcast %0 : f32 to vector<8x128xf32>
    %81 = arith.subf %79, %80 : vector<8x128xf32>
    %cst_33 = arith.constant 0.000000e+00 : f32
    %82 = vector.broadcast %cst_33 : f32 to vector<8x128xf32>
    %83 = arith.maximumf %81, %82 : vector<8x128xf32>
    %84 = vector.broadcast %69 : f32 to vector<8x128xf32>
    %85 = arith.mulf %84, %83 : vector<8x128xf32>
    %86 = arith.subf %77, %85 : vector<8x128xf32>
    %87 = vector.broadcast %0 : f32 to vector<8x128xf32>
    %88 = arith.subf %64, %87 : vector<8x128xf32>
    %cst_34 = arith.constant 0.000000e+00 : f32
    %89 = vector.broadcast %cst_34 : f32 to vector<8x128xf32>
    %90 = arith.maximumf %88, %89 : vector<8x128xf32>
    %91 = vector.broadcast %69 : f32 to vector<8x128xf32>
    %92 = arith.mulf %91, %90 : vector<8x128xf32>
    %93 = arith.addf %86, %92 : vector<8x128xf32>
    %94 = vector.broadcast %65 : f32 to vector<8x128xf32>
    %95 = arith.subf %64, %94 : vector<8x128xf32>
    %cst_35 = arith.constant 0.000000e+00 : f32
    %96 = vector.broadcast %cst_35 : f32 to vector<8x128xf32>
    %97 = arith.maximumf %95, %96 : vector<8x128xf32>
    %98 = vector.broadcast %67 : f32 to vector<8x128xf32>
    %99 = arith.mulf %98, %97 : vector<8x128xf32>
    %100 = arith.subf %93, %99 : vector<8x128xf32>
    %cst_36 = arith.constant dense<0.000000e+00> : vector<8x128xf32>
    %101 = tpu.matmul %100, %4, %cst_36 {dimension_numbers = #tpu.dot_dimension_numbers<[1], [0], [0], [1], [0, 0, 1, 1], [], []>} : vector<8x128xf32>, vector<128x128xf32>, vector<8x128xf32> -> vector<8x128xf32>
    %c2_37 = arith.constant 2 : index
    %c0_38 = arith.constant 0 : index
    %c0_39 = arith.constant 0 : index
    %102 = vector.load %arg6[%c2_37, %c0_38, %c0_39] : memref<6x8x128xf32, #tpu.memory_space<vmem>>, vector<1x8x128xf32>
    %103 = vector.shape_cast %102 : vector<1x8x128xf32> to vector<8x128xf32>
    %104 = vector.shape_cast %101 : vector<8x128xf32> to vector<1x8x128xf32>
    tpu.vector_store %arg6[%c2_37, %c0_38, %c0_39], %104 {strides = array<i32>} : memref<6x8x128xf32, #tpu.memory_space<vmem>>, vector<1x8x128xf32>,
    %c4 = arith.constant 4 : index
    %105 = memref.load %arg1[%c4] : memref<7xf32, #tpu.memory_space<smem>>
    %106 = arith.subf %101, %54 : vector<8x128xf32>
    %107 = vector.broadcast %105 : f32 to vector<8x128xf32>
    %108 = arith.mulf %107, %106 : vector<8x128xf32>
    %109 = arith.addf %101, %108 : vector<8x128xf32>
    %cst_40 = arith.constant dense<0.000000e+00> : vector<8x128xf32>
    %110 = tpu.matmul %109, %3, %cst_40 {dimension_numbers = #tpu.dot_dimension_numbers<[1], [0], [0], [1], [0, 0, 1, 1], [], []>} : vector<8x128xf32>, vector<128x128xf32>, vector<8x128xf32> -> vector<8x128xf32>
    %111 = arith.addf %110, %6 : vector<8x128xf32>
    %112 = arith.mulf %0, %1 : f32
    %cst_41 = arith.constant 1.000000e+00 : f32
    %113 = arith.subf %1, %cst_41 : f32
    %cst_42 = arith.constant 1.000000e+00 : f32
    %114 = arith.divf %cst_42, %113 : f32
    %cst_43 = arith.constant 1.000000e+00 : f32
    %115 = arith.subf %1, %cst_43 : f32
    %116 = arith.divf %1, %115 : f32
    %cst_44 = arith.constant 0.000000e+00 : f32
    %117 = vector.broadcast %cst_44 : f32 to vector<8x128xf32>
    %118 = arith.subf %117, %111 : vector<8x128xf32>
    %119 = vector.broadcast %112 : f32 to vector<8x128xf32>
    %120 = arith.subf %118, %119 : vector<8x128xf32>
    %cst_45 = arith.constant 0.000000e+00 : f32
    %121 = vector.broadcast %cst_45 : f32 to vector<8x128xf32>
    %122 = arith.maximumf %120, %121 : vector<8x128xf32>
    %123 = vector.broadcast %114 : f32 to vector<8x128xf32>
    %124 = arith.mulf %123, %122 : vector<8x128xf32>
    %cst_46 = arith.constant 0.000000e+00 : f32
    %125 = vector.broadcast %cst_46 : f32 to vector<8x128xf32>
    %126 = arith.subf %125, %111 : vector<8x128xf32>
    %127 = vector.broadcast %0 : f32 to vector<8x128xf32>
    %128 = arith.subf %126, %127 : vector<8x128xf32>
    %cst_47 = arith.constant 0.000000e+00 : f32
    %129 = vector.broadcast %cst_47 : f32 to vector<8x128xf32>
    %130 = arith.maximumf %128, %129 : vector<8x128xf32>
    %131 = vector.broadcast %116 : f32 to vector<8x128xf32>
    %132 = arith.mulf %131, %130 : vector<8x128xf32>
    %133 = arith.subf %124, %132 : vector<8x128xf32>
    %134 = vector.broadcast %0 : f32 to vector<8x128xf32>
    %135 = arith.subf %111, %134 : vector<8x128xf32>
    %cst_48 = arith.constant 0.000000e+00 : f32
    %136 = vector.broadcast %cst_48 : f32 to vector<8x128xf32>
    %137 = arith.maximumf %135, %136 : vector<8x128xf32>
    %138 = vector.broadcast %116 : f32 to vector<8x128xf32>
    %139 = arith.mulf %138, %137 : vector<8x128xf32>
    %140 = arith.addf %133, %139 : vector<8x128xf32>
    %141 = vector.broadcast %112 : f32 to vector<8x128xf32>
    %142 = arith.subf %111, %141 : vector<8x128xf32>
    %cst_49 = arith.constant 0.000000e+00 : f32
    %143 = vector.broadcast %cst_49 : f32 to vector<8x128xf32>
    %144 = arith.maximumf %142, %143 : vector<8x128xf32>
    %145 = vector.broadcast %114 : f32 to vector<8x128xf32>
    %146 = arith.mulf %145, %144 : vector<8x128xf32>
    %147 = arith.subf %140, %146 : vector<8x128xf32>
    %cst_50 = arith.constant dense<0.000000e+00> : vector<8x128xf32>
    %148 = tpu.matmul %147, %4, %cst_50 {dimension_numbers = #tpu.dot_dimension_numbers<[1], [0], [0], [1], [0, 0, 1, 1], [], []>} : vector<8x128xf32>, vector<128x128xf32>, vector<8x128xf32> -> vector<8x128xf32>
    %c3_51 = arith.constant 3 : index
    %c0_52 = arith.constant 0 : index
    %c0_53 = arith.constant 0 : index
    %149 = vector.load %arg6[%c3_51, %c0_52, %c0_53] : memref<6x8x128xf32, #tpu.memory_space<vmem>>, vector<1x8x128xf32>
    %150 = vector.shape_cast %149 : vector<1x8x128xf32> to vector<8x128xf32>
    %151 = vector.shape_cast %148 : vector<8x128xf32> to vector<1x8x128xf32>
    tpu.vector_store %arg6[%c3_51, %c0_52, %c0_53], %151 {strides = array<i32>} : memref<6x8x128xf32, #tpu.memory_space<vmem>>, vector<1x8x128xf32>,
    %c5 = arith.constant 5 : index
    %152 = memref.load %arg1[%c5] : memref<7xf32, #tpu.memory_space<smem>>
    %153 = arith.subf %148, %101 : vector<8x128xf32>
    %154 = vector.broadcast %152 : f32 to vector<8x128xf32>
    %155 = arith.mulf %154, %153 : vector<8x128xf32>
    %156 = arith.addf %148, %155 : vector<8x128xf32>
    %cst_54 = arith.constant dense<0.000000e+00> : vector<8x128xf32>
    %157 = tpu.matmul %156, %3, %cst_54 {dimension_numbers = #tpu.dot_dimension_numbers<[1], [0], [0], [1], [0, 0, 1, 1], [], []>} : vector<8x128xf32>, vector<128x128xf32>, vector<8x128xf32> -> vector<8x128xf32>
    %158 = arith.addf %157, %6 : vector<8x128xf32>
    %159 = arith.mulf %0, %1 : f32
    %cst_55 = arith.constant 1.000000e+00 : f32
    %160 = arith.subf %1, %cst_55 : f32
    %cst_56 = arith.constant 1.000000e+00 : f32
    %161 = arith.divf %cst_56, %160 : f32
    %cst_57 = arith.constant 1.000000e+00 : f32
    %162 = arith.subf %1, %cst_57 : f32
    %163 = arith.divf %1, %162 : f32
    %cst_58 = arith.constant 0.000000e+00 : f32
    %164 = vector.broadcast %cst_58 : f32 to vector<8x128xf32>
    %165 = arith.subf %164, %158 : vector<8x128xf32>
    %166 = vector.broadcast %159 : f32 to vector<8x128xf32>
    %167 = arith.subf %165, %166 : vector<8x128xf32>
    %cst_59 = arith.constant 0.000000e+00 : f32
    %168 = vector.broadcast %cst_59 : f32 to vector<8x128xf32>
    %169 = arith.maximumf %167, %168 : vector<8x128xf32>
    %170 = vector.broadcast %161 : f32 to vector<8x128xf32>
    %171 = arith.mulf %170, %169 : vector<8x128xf32>
    %cst_60 = arith.constant 0.000000e+00 : f32
    %172 = vector.broadcast %cst_60 : f32 to vector<8x128xf32>
    %173 = arith.subf %172, %158 : vector<8x128xf32>
    %174 = vector.broadcast %0 : f32 to vector<8x128xf32>
    %175 = arith.subf %173, %174 : vector<8x128xf32>
    %cst_61 = arith.constant 0.000000e+00 : f32
    %176 = vector.broadcast %cst_61 : f32 to vector<8x128xf32>
    %177 = arith.maximumf %175, %176 : vector<8x128xf32>
    %178 = vector.broadcast %163 : f32 to vector<8x128xf32>
    %179 = arith.mulf %178, %177 : vector<8x128xf32>
    %180 = arith.subf %171, %179 : vector<8x128xf32>
    %181 = vector.broadcast %0 : f32 to vector<8x128xf32>
    %182 = arith.subf %158, %181 : vector<8x128xf32>
    %cst_62 = arith.constant 0.000000e+00 : f32
    %183 = vector.broadcast %cst_62 : f32 to vector<8x128xf32>
    %184 = arith.maximumf %182, %183 : vector<8x128xf32>
    %185 = vector.broadcast %163 : f32 to vector<8x128xf32>
    %186 = arith.mulf %185, %184 : vector<8x128xf32>
    %187 = arith.addf %180, %186 : vector<8x128xf32>
    %188 = vector.broadcast %159 : f32 to vector<8x128xf32>
    %189 = arith.subf %158, %188 : vector<8x128xf32>
    %cst_63 = arith.constant 0.000000e+00 : f32
    %190 = vector.broadcast %cst_63 : f32 to vector<8x128xf32>
    %191 = arith.maximumf %189, %190 : vector<8x128xf32>
    %192 = vector.broadcast %161 : f32 to vector<8x128xf32>
    %193 = arith.mulf %192, %191 : vector<8x128xf32>
    %194 = arith.subf %187, %193 : vector<8x128xf32>
    %cst_64 = arith.constant dense<0.000000e+00> : vector<8x128xf32>
    %195 = tpu.matmul %194, %4, %cst_64 {dimension_numbers = #tpu.dot_dimension_numbers<[1], [0], [0], [1], [0, 0, 1, 1], [], []>} : vector<8x128xf32>, vector<128x128xf32>, vector<8x128xf32> -> vector<8x128xf32>
    %c4_65 = arith.constant 4 : index
    %c0_66 = arith.constant 0 : index
    %c0_67 = arith.constant 0 : index
    %196 = vector.load %arg6[%c4_65, %c0_66, %c0_67] : memref<6x8x128xf32, #tpu.memory_space<vmem>>, vector<1x8x128xf32>
    %197 = vector.shape_cast %196 : vector<1x8x128xf32> to vector<8x128xf32>
    %198 = vector.shape_cast %195 : vector<8x128xf32> to vector<1x8x128xf32>
    tpu.vector_store %arg6[%c4_65, %c0_66, %c0_67], %198 {strides = array<i32>} : memref<6x8x128xf32, #tpu.memory_space<vmem>>, vector<1x8x128xf32>,
    %c6 = arith.constant 6 : index
    %199 = memref.load %arg1[%c6] : memref<7xf32, #tpu.memory_space<smem>>
    %200 = arith.subf %195, %148 : vector<8x128xf32>
    %201 = vector.broadcast %199 : f32 to vector<8x128xf32>
    %202 = arith.mulf %201, %200 : vector<8x128xf32>
    %203 = arith.addf %195, %202 : vector<8x128xf32>
    %cst_68 = arith.constant dense<0.000000e+00> : vector<8x128xf32>
    %204 = tpu.matmul %203, %3, %cst_68 {dimension_numbers = #tpu.dot_dimension_numbers<[1], [0], [0], [1], [0, 0, 1, 1], [], []>} : vector<8x128xf32>, vector<128x128xf32>, vector<8x128xf32> -> vector<8x128xf32>
    %205 = arith.addf %204, %6 : vector<8x128xf32>
    %206 = arith.mulf %0, %1 : f32
    %cst_69 = arith.constant 1.000000e+00 : f32
    %207 = arith.subf %1, %cst_69 : f32
    %cst_70 = arith.constant 1.000000e+00 : f32
    %208 = arith.divf %cst_70, %207 : f32
    %cst_71 = arith.constant 1.000000e+00 : f32
    %209 = arith.subf %1, %cst_71 : f32
    %210 = arith.divf %1, %209 : f32
    %cst_72 = arith.constant 0.000000e+00 : f32
    %211 = vector.broadcast %cst_72 : f32 to vector<8x128xf32>
    %212 = arith.subf %211, %205 : vector<8x128xf32>
    %213 = vector.broadcast %206 : f32 to vector<8x128xf32>
    %214 = arith.subf %212, %213 : vector<8x128xf32>
    %cst_73 = arith.constant 0.000000e+00 : f32
    %215 = vector.broadcast %cst_73 : f32 to vector<8x128xf32>
    %216 = arith.maximumf %214, %215 : vector<8x128xf32>
    %217 = vector.broadcast %208 : f32 to vector<8x128xf32>
    %218 = arith.mulf %217, %216 : vector<8x128xf32>
    %cst_74 = arith.constant 0.000000e+00 : f32
    %219 = vector.broadcast %cst_74 : f32 to vector<8x128xf32>
    %220 = arith.subf %219, %205 : vector<8x128xf32>
    %221 = vector.broadcast %0 : f32 to vector<8x128xf32>
    %222 = arith.subf %220, %221 : vector<8x128xf32>
    %cst_75 = arith.constant 0.000000e+00 : f32
    %223 = vector.broadcast %cst_75 : f32 to vector<8x128xf32>
    %224 = arith.maximumf %222, %223 : vector<8x128xf32>
    %225 = vector.broadcast %210 : f32 to vector<8x128xf32>
    %226 = arith.mulf %225, %224 : vector<8x128xf32>
    %227 = arith.subf %218, %226 : vector<8x128xf32>
    %228 = vector.broadcast %0 : f32 to vector<8x128xf32>
    %229 = arith.subf %205, %228 : vector<8x128xf32>
    %cst_76 = arith.constant 0.000000e+00 : f32
    %230 = vector.broadcast %cst_76 : f32 to vector<8x128xf32>
    %231 = arith.maximumf %229, %230 : vector<8x128xf32>
    %232 = vector.broadcast %210 : f32 to vector<8x128xf32>
    %233 = arith.mulf %232, %231 : vector<8x128xf32>
    %234 = arith.addf %227, %233 : vector<8x128xf32>
    %235 = vector.broadcast %206 : f32 to vector<8x128xf32>
    %236 = arith.subf %205, %235 : vector<8x128xf32>
    %cst_77 = arith.constant 0.000000e+00 : f32
    %237 = vector.broadcast %cst_77 : f32 to vector<8x128xf32>
    %238 = arith.maximumf %236, %237 : vector<8x128xf32>
    %239 = vector.broadcast %208 : f32 to vector<8x128xf32>
    %240 = arith.mulf %239, %238 : vector<8x128xf32>
    %241 = arith.subf %234, %240 : vector<8x128xf32>
    %cst_78 = arith.constant dense<0.000000e+00> : vector<8x128xf32>
    %242 = tpu.matmul %241, %4, %cst_78 {dimension_numbers = #tpu.dot_dimension_numbers<[1], [0], [0], [1], [0, 0, 1, 1], [], []>} : vector<8x128xf32>, vector<128x128xf32>, vector<8x128xf32> -> vector<8x128xf32>
    %c5_79 = arith.constant 5 : index
    %c0_80 = arith.constant 0 : index
    %c0_81 = arith.constant 0 : index
    %243 = vector.load %arg6[%c5_79, %c0_80, %c0_81] : memref<6x8x128xf32, #tpu.memory_space<vmem>>, vector<1x8x128xf32>
    %244 = vector.shape_cast %243 : vector<1x8x128xf32> to vector<8x128xf32>
    %245 = vector.shape_cast %242 : vector<8x128xf32> to vector<1x8x128xf32>
    tpu.vector_store %arg6[%c5_79, %c0_80, %c0_81], %245 {strides = array<i32>} : memref<6x8x128xf32, #tpu.memory_space<vmem>>, vector<1x8x128xf32>,
    return
  }
  func.func @transform_0(%arg0: i32) -> i32 {
    %c0_i32 = arith.constant 0 : i32
    %c0_i32_0 = arith.constant 0 : i32
    return %c0_i32 : i32
  }
  func.func @transform_1(%arg0: i32) -> (i32, i32) {
    %c0_i32 = arith.constant 0 : i32
    %c0_i32_0 = arith.constant 0 : i32
    return %arg0, %c0_i32 : i32, i32
  }
  func.func @transform_2(%arg0: i32) -> (i32, i32) {
    %c0_i32 = arith.constant 0 : i32
    %c0_i32_0 = arith.constant 0 : i32
    %c0_i32_1 = arith.constant 0 : i32
    return %c0_i32, %c0_i32_0 : i32, i32
  }
  func.func @transform_3(%arg0: i32) -> (i32, i32) {
    %c0_i32 = arith.constant 0 : i32
    %c0_i32_0 = arith.constant 0 : i32
    %c0_i32_1 = arith.constant 0 : i32
    return %c0_i32, %c0_i32_0 : i32, i32
  }
  func.func @transform_4(%arg0: i32) -> (i32, i32) {
    %c0_i32 = arith.constant 0 : i32
    %c0_i32_0 = arith.constant 0 : i32
    %c0_i32_1 = arith.constant 0 : i32
    return %c0_i32, %c0_i32_0 : i32, i32
  }
  func.func @transform_5(%arg0: i32) -> (i32, i32, i32) {
    %c0_i32 = arith.constant 0 : i32
    %c0_i32_0 = arith.constant 0 : i32
    %c0_i32_1 = arith.constant 0 : i32
    return %c0_i32, %arg0, %c0_i32_0 : i32, i32, i32
  }
}

</mosaic_0001>

<llo_original>
// kernel: tpu_custom_call.1
$region0: #{tpu_custom_call.1}
  #allocation0 [shape = 'u32[]', space=smem, size = 0x4, offset = 0x4, fixed_abs, tag = 'smem constant byte address 0x4 - core index']
  #allocation1 [shape = 'u32[144,128]{1,0:T(1,128)}', space=vmem, size = 0x12000, scoped, tag = 'internal scratch']
  %s0 = inlined_call_operand.hbm [shape: f32[7], index: 0, kind: input, shape index: {}]
  %s1 = inlined_call_operand.hbm [shape: f32[8,16], index: 1, kind: input, shape index: {}]
  %s2 = inlined_call_operand.hbm [shape: f32[128,128], index: 2, kind: input, shape index: {}]
  %s3 = inlined_call_operand.hbm [shape: f32[128,128], index: 3, kind: input, shape index: {}]
  %s4 = inlined_call_operand.hbm [shape: f32[16,128], index: 4, kind: input, shape index: {}]
  %s5 = inlined_call_operand.hbm [shape: f32[6,8,128], index: 5, kind: output, shape index: {}]
  %s6 = sld [smem:[#allocation0]]
  $region50: #{tpu_custom_call.1} parent=0
    _
  %s8 = ssub.s32 1, %s6
  %s9 = scalar_select 0, %s8, %s6
  $region1: #{tpu_custom_call.1} parent=0
    #allocation2 [shape = 'u8[512]{0}', space=smem, size = 0x200, scoped, tag = 'input window, operand 0, single buffered']
    #allocation3 [shape = 's32[1]{0}', space=sflag, size = 0x4, scoped, tag = 'scoped memory for tpu_custom_call.1']
    #allocation4 [shape = 's32[1]{0}', space=sflag, size = 0x4, scoped, tag = 'scoped memory for tpu_custom_call.1']
    #allocation5 [shape = 's32[1]{0}', space=sflag, size = 0x4, scoped, tag = 'scoped memory for tpu_custom_call.1']
    #allocation6 [shape = 'u8[4096]{0}', space=vmem, size = 0x1000, scoped, tag = 'input window, operand 1, single buffered']
    #allocation7 [shape = 'u8[65536]{0}', space=vmem, size = 0x10000, scoped, tag = 'input window, operand 2, single buffered']
    #allocation8 [shape = 's32[1]{0}', space=sflag, size = 0x4, scoped, tag = 'scoped memory for tpu_custom_call.1']
    #allocation9 [shape = 'u8[65536]{0}', space=vmem, size = 0x10000, scoped, tag = 'input window, operand 3, single buffered']
    #allocation10 [shape = 'u8[8192]{0}', space=vmem, size = 0x2000, scoped, tag = 'input window, operand 4, single buffered']
    #allocation11 [shape = 's32[1]{0}', space=sflag, size = 0x4, scoped, tag = 'scoped memory for tpu_custom_call.1']
    #allocation12 [shape = 'u8[24576]{0}', space=vmem, size = 0x6000, scoped, tag = 'output window, operand 0, single buffered']
    %10 = vsyncpa [#allocation5], 0
    %11 = vsyncpa [#allocation3], 0
    %12 = vsyncpa [#allocation8], 0
    %13 = vsyncpa [#allocation11], 0
    %14 = vsyncpa [#allocation4], 0
    // Predicated region
    $region2: #{tpu_custom_call.1} parent=1 // pred_check
      _
    $region3: #{tpu_custom_call.1} parent=1 // pred_check_branch
      %16 = sbr.rel (0) target = $region5
    $region4: #{tpu_custom_call.1} parent=1 // pred_region
      %s18 = ssub.s32 16, 16
      %19 = vsyncadd [#allocation5], %s18
      %22 = dma.hbm_to_smem %s0, 16, [#allocation2], [#allocation5]
    $region5: #{tpu_custom_call.1} parent=1 // pred_fallthru
      _
    // Predicated region
    $region6: #{tpu_custom_call.1} parent=1 // pred_check
      _
    $region7: #{tpu_custom_call.1} parent=1 // pred_check_branch
      %24 = sbr.rel (0) target = $region9
    $region8: #{tpu_custom_call.1} parent=1 // pred_region
      %s26 = ssub.s32 128, 128
      %27 = vsyncadd [#allocation3], %s26
      %s29 = sshll.u32 [#allocation6], 4
      %s30 = int_to_ptr.vmem [resolvable:$true] %s29
      %32 = dma.hbm_to_vmem [thread:$0]  %s1, 128, %s30, [#allocation3]
    $region9: #{tpu_custom_call.1} parent=1 // pred_fallthru
      _
    // Predicated region
    $region10: #{tpu_custom_call.1} parent=1 // pred_check
      _
    $region11: #{tpu_custom_call.1} parent=1 // pred_check_branch
      %34 = sbr.rel (0) target = $region13
    $region12: #{tpu_custom_call.1} parent=1 // pred_region
      %s36 = ssub.s32 2048, 2048
      %37 = vsyncadd [#allocation8], %s36
      %s38 = sshll.u32 [#allocation7], 4
      %s39 = int_to_ptr.vmem [resolvable:$true] %s38
      %44 = dma.hbm_to_vmem [thread:$0]  %s2, 2048, %s39, [#allocation8], 128, 128, 8
    $region13: #{tpu_custom_call.1} parent=1 // pred_fallthru
      _
    // Predicated region
    $region14: #{tpu_custom_call.1} parent=1 // pred_check
      _
    $region15: #{tpu_custom_call.1} parent=1 // pred_check_branch
      %46 = sbr.rel (0) target = $region17
    $region16: #{tpu_custom_call.1} parent=1 // pred_region
      %s48 = ssub.s32 2048, 2048
      %49 = vsyncadd [#allocation8], %s48
      %s50 = sshll.u32 [#allocation9], 4
      %s51 = int_to_ptr.vmem [resolvable:$true] %s50
      %56 = dma.hbm_to_vmem [thread:$0]  %s3, 2048, %s51, [#allocation8], 128, 128, 8
    $region17: #{tpu_custom_call.1} parent=1 // pred_fallthru
      _
    // Predicated region
    $region18: #{tpu_custom_call.1} parent=1 // pred_check
      _
    $region19: #{tpu_custom_call.1} parent=1 // pred_check_branch
      %58 = sbr.rel (0) target = $region21
    $region20: #{tpu_custom_call.1} parent=1 // pred_region
      %s60 = ssub.s32 256, 256
      %61 = vsyncadd [#allocation11], %s60
      %s62 = sshll.u32 [#allocation10], 4
      %s63 = int_to_ptr.vmem [resolvable:$true] %s62
      %68 = dma.hbm_to_vmem [thread:$0]  %s4, 256, %s63, [#allocation11], 128, 128, 8
    $region21: #{tpu_custom_call.1} parent=1 // pred_fallthru
      _
    // Predicated region
    $region22: #{tpu_custom_call.1} parent=1 // pred_check
      _
    $region23: #{tpu_custom_call.1} parent=1 // pred_check_branch
      %70 = sbr.rel (0) target = $region25
    $region24: #{tpu_custom_call.1} parent=1 // pred_region
      %71 = dma.done [#allocation5], 16
    $region25: #{tpu_custom_call.1} parent=1 // pred_fallthru
      _
    // Predicated region
    $region26: #{tpu_custom_call.1} parent=1 // pred_check
      _
    $region27: #{tpu_custom_call.1} parent=1 // pred_check_branch
      %73 = sbr.rel (0) target = $region29
    $region28: #{tpu_custom_call.1} parent=1 // pred_region
      %74 = dma.done [#allocation3], 128
    $region29: #{tpu_custom_call.1} parent=1 // pred_fallthru
      _
    // Predicated region
    $region30: #{tpu_custom_call.1} parent=1 // pred_check
      _
    $region31: #{tpu_custom_call.1} parent=1 // pred_check_branch
      %76 = sbr.rel (0) target = $region33
    $region32: #{tpu_custom_call.1} parent=1 // pred_region
      %77 = dma.done [#allocation8], 2048
    $region33: #{tpu_custom_call.1} parent=1 // pred_fallthru
      _
    // Predicated region
    $region34: #{tpu_custom_call.1} parent=1 // pred_check
      _
    $region35: #{tpu_custom_call.1} parent=1 // pred_check_branch
      %79 = sbr.rel (0) target = $region37
    $region36: #{tpu_custom_call.1} parent=1 // pred_region
      %80 = dma.done [#allocation8], 2048
    $region37: #{tpu_custom_call.1} parent=1 // pred_fallthru
      _
    // Predicated region
    $region38: #{tpu_custom_call.1} parent=1 // pred_check
      _
    $region39: #{tpu_custom_call.1} parent=1 // pred_check_branch
      %82 = sbr.rel (0) target = $region41
    $region40: #{tpu_custom_call.1} parent=1 // pred_region
      %83 = dma.done [#allocation11], 256
    $region41: #{tpu_custom_call.1} parent=1 // pred_fallthru
      _
    %84 = sfence
    %s85 = sld [smem:[#allocation2]]
    %s86 = sld [smem:[#allocation2 + $0x1]]
    %v87 = vld [vmem:[#allocation6] sm:$0xff]
    %v88 = vld [vmem:[#allocation7] sm:$0xff]
    %v89 = vld [vmem:[#allocation7 + $0x8] sm:$0xff]
    %v90 = vld [vmem:[#allocation7 + $0x10] sm:$0xff]
    %v91 = vld [vmem:[#allocation7 + $0x18] sm:$0xff]
    %v92 = vld [vmem:[#allocation7 + $0x20] sm:$0xff]
    %v93 = vld [vmem:[#allocation7 + $0x28] sm:$0xff]
    %v94 = vld [vmem:[#allocation7 + $0x30] sm:$0xff]
    %v95 = vld [vmem:[#allocation7 + $0x38] sm:$0xff]
    %v96 = vld [vmem:[#allocation7 + $0x40] sm:$0xff]
    %v97 = vld [vmem:[#allocation7 + $0x48] sm:$0xff]
    %v98 = vld [vmem:[#allocation7 + $0x50] sm:$0xff]
    %v99 = vld [vmem:[#allocation7 + $0x58] sm:$0xff]
    %v100 = vld [vmem:[#allocation7 + $0x60] sm:$0xff]
    %v101 = vld [vmem:[#allocation7 + $0x68] sm:$0xff]
    %v102 = vld [vmem:[#allocation7 + $0x70] sm:$0xff]
    %v103 = vld [vmem:[#allocation7 + $0x78] sm:$0xff]
    %v104 = vld [vmem:[#allocation9] sm:$0xff]
    %v105 = vld [vmem:[#allocation9 + $0x8] sm:$0xff]
    %v106 = vld [vmem:[#allocation9 + $0x10] sm:$0xff]
    %v107 = vld [vmem:[#allocation9 + $0x18] sm:$0xff]
    %v108 = vld [vmem:[#allocation9 + $0x20] sm:$0xff]
    %v109 = vld [vmem:[#allocation9 + $0x28] sm:$0xff]
    %v110 = vld [vmem:[#allocation9 + $0x30] sm:$0xff]
    %v111 = vld [vmem:[#allocation9 + $0x38] sm:$0xff]
    %v112 = vld [vmem:[#allocation9 + $0x40] sm:$0xff]
    %v113 = vld [vmem:[#allocation9 + $0x48] sm:$0xff]
    %v114 = vld [vmem:[#allocation9 + $0x50] sm:$0xff]
    %v115 = vld [vmem:[#allocation9 + $0x58] sm:$0xff]
    %v116 = vld [vmem:[#allocation9 + $0x60] sm:$0xff]
    %v117 = vld [vmem:[#allocation9 + $0x68] sm:$0xff]
    %v118 = vld [vmem:[#allocation9 + $0x70] sm:$0xff]
    %v119 = vld [vmem:[#allocation9 + $0x78] sm:$0xff]
    %v120 = vld [vmem:[#allocation10] sm:$0xff]
    %v121 = vld [vmem:[#allocation10 + $0x8] sm:$0xff]
    %vm122 = vcmask 130048
    %v124 = vsel %vm122, %v87, 0
    %126 = vmatprep.subr.mxu0 0.0
    %127 = vmatpush1.msra.mxu0 %v120
    %128 = vmatprep.subr.mxu0 0.0
    %129 = vmatpush1.msra.mxu0 %v121
    %130 = vmatprep.subr.mxu0 0.0
    %131 = vmatpush1.msra.mxu0 0.0
    %132 = vmatprep.subr.mxu0 0.0
    %133 = vmatpush1.msra.mxu0 0.0
    %134 = vmatprep.subr.mxu0 0.0
    %135 = vmatpush1.msra.mxu0 0.0
    %136 = vmatprep.subr.mxu0 0.0
    %137 = vmatpush1.msra.mxu0 0.0
    %138 = vmatprep.subr.mxu0 0.0
    %139 = vmatpush1.msra.mxu0 0.0
    %140 = vmatprep.subr.mxu0 0.0
    %141 = vmatpush1.msra.mxu0 0.0
    %142 = vmatprep.subr.mxu0 0.0
    %143 = vmatpush1.msra.mxu0 0.0
    %144 = vmatprep.subr.mxu0 0.0
    %145 = vmatpush1.msra.mxu0 0.0
    %146 = vmatprep.subr.mxu0 0.0
    %147 = vmatpush1.msra.mxu0 0.0
    %148 = vmatprep.subr.mxu0 0.0
    %149 = vmatpush1.msra.mxu0 0.0
    %150 = vmatprep.subr.mxu0 0.0
    %151 = vmatpush1.msra.mxu0 0.0
    %152 = vmatprep.subr.mxu0 0.0
    %153 = vmatpush1.msra.mxu0 0.0
    %154 = vmatprep.subr.mxu0 0.0
    %155 = vmatpush1.msra.mxu0 0.0
    %156 = vmatprep.subr.mxu0 0.0
    %157 = vmatpush1.msra.mxu0 0.0
    %158 = vmatprep.subr.mxu0 0.0
    %159 = vmatpush1.msra.mxu0 0.0
    %160 = vmatprep.subr.mxu0 0.0
    %161 = vmatpush1.msra.mxu0 0.0
    %162 = vmatprep.subr.mxu0 0.0
    %163 = vmatpush1.msra.mxu0 0.0
    %164 = vmatprep.subr.mxu0 0.0
    %165 = vmatpush1.msra.mxu0 0.0
    %166 = vmatprep.subr.mxu0 0.0
    %167 = vmatpush1.msra.mxu0 0.0
    %168 = vmatprep.subr.mxu0 0.0
    %169 = vmatpush1.msra.mxu0 0.0
    %170 = vmatprep.subr.mxu0 0.0
    %171 = vmatpush1.msra.mxu0 0.0
    %172 = vmatprep.subr.mxu0 0.0
    %173 = vmatpush1.msra.mxu0 0.0
    %174 = vmatprep.subr.mxu0 0.0
    %175 = vmatpush1.msra.mxu0 0.0
    %176 = vmatprep.subr.mxu0 0.0
    %177 = vmatpush1.msra.mxu0 0.0
    %178 = vmatprep.subr.mxu0 0.0
    %179 = vmatpush1.msra.mxu0 0.0
    %180 = vmatprep.subr.mxu0 0.0
    %181 = vmatpush1.msra.mxu0 0.0
    %182 = vmatprep.subr.mxu0 0.0
    %183 = vmatpush1.msra.mxu0 0.0
    %184 = vmatprep.subr.mxu0 0.0
    %185 = vmatpush1.msra.mxu0 0.0
    %186 = vmatprep.subr.mxu0 0.0
    %187 = vmatpush1.msra.mxu0 0.0
    %188 = vmatprep.subr.mxu0 0.0
    %189 = vmatpush1.msra.mxu0 0.0
    %190 = vmatprep.mubr.f32.mxu0 0.0
    %191 = vmatmul.mubr.f32.gmra.mrb[0].mxu0 %v124
    %v192 = vpop.f32.mrb[0].mxu0
    %v193 = vadd.f32 0.0, %v192
    %v194 = vpop.f32.mrb[0].mxu0
    %195 = vdwg.mxu0
    %196 = vst [vmem:[#allocation12] sm:$0xff] 0.0
    %s197 = sld [smem:[#allocation2 + $0x2]]
    %v198 = vstv %s197
    %v199 = vmul.f32 %v198, 0.0
    %v200 = vadd.f32 %v199, 0.0
    %201 = vmatprep.subr.mxu0 0.0
    %202 = vmatpush1.msra.mxu0 %v88
    %203 = vmatprep.subr.mxu0 0.0
    %204 = vmatpush1.msra.mxu0 %v89
    %205 = vmatprep.subr.mxu0 0.0
    %206 = vmatpush1.msra.mxu0 %v90
    %207 = vmatprep.subr.mxu0 0.0
    %208 = vmatpush1.msra.mxu0 %v91
    %209 = vmatprep.subr.mxu0 0.0
    %210 = vmatpush1.msra.mxu0 %v92
    %211 = vmatprep.subr.mxu0 0.0
    %212 = vmatpush1.msra.mxu0 %v93
    %213 = vmatprep.subr.mxu0 0.0
    %214 = vmatpush1.msra.mxu0 %v94
    %215 = vmatprep.subr.mxu0 0.0
    %216 = vmatpush1.msra.mxu0 %v95
    %217 = vmatprep.subr.mxu0 0.0
    %218 = vmatpush1.msra.mxu0 %v96
    %219 = vmatprep.subr.mxu0 0.0
    %220 = vmatpush1.msra.mxu0 %v97
    %221 = vmatprep.subr.mxu0 0.0
    %222 = vmatpush1.msra.mxu0 %v98
    %223 = vmatprep.subr.mxu0 0.0
    %224 = vmatpush1.msra.mxu0 %v99
    %225 = vmatprep.subr.mxu0 0.0
    %226 = vmatpush1.msra.mxu0 %v100
    %227 = vmatprep.subr.mxu0 0.0
    %228 = vmatpush1.msra.mxu0 %v101
    %229 = vmatprep.subr.mxu0 0.0
    %230 = vmatpush1.msra.mxu0 %v102
    %231 = vmatprep.subr.mxu0 0.0
    %232 = vmatpush1.msra.mxu0 %v103
    %233 = vmatprep.subr.mxu0 0.0
    %234 = vmatpush1.msra.mxu0 0.0
    %235 = vmatprep.subr.mxu0 0.0
    %236 = vmatpush1.msra.mxu0 0.0
    %237 = vmatprep.subr.mxu0 0.0
    %238 = vmatpush1.msra.mxu0 0.0
    %239 = vmatprep.subr.mxu0 0.0
    %240 = vmatpush1.msra.mxu0 0.0
    %241 = vmatprep.subr.mxu0 0.0
    %242 = vmatpush1.msra.mxu0 0.0
    %243 = vmatprep.subr.mxu0 0.0
    %244 = vmatpush1.msra.mxu0 0.0
    %245 = vmatprep.subr.mxu0 0.0
    %246 = vmatpush1.msra.mxu0 0.0
    %247 = vmatprep.subr.mxu0 0.0
    %248 = vmatpush1.msra.mxu0 0.0
    %249 = vmatprep.subr.mxu0 0.0
    %250 = vmatpush1.msra.mxu0 0.0
    %251 = vmatprep.subr.mxu0 0.0
    %252 = vmatpush1.msra.mxu0 0.0
    %253 = vmatprep.subr.mxu0 0.0
    %254 = vmatpush1.msra.mxu0 0.0
    %255 = vmatprep.subr.mxu0 0.0
    %256 = vmatpush1.msra.mxu0 0.0
    %257 = vmatprep.subr.mxu0 0.0
    %258 = vmatpush1.msra.mxu0 0.0
    %259 = vmatprep.subr.mxu0 0.0
    %260 = vmatpush1.msra.mxu0 0.0
    %261 = vmatprep.subr.mxu0 0.0
    %262 = vmatpush1.msra.mxu0 0.0
    %263 = vmatprep.subr.mxu0 0.0
    %264 = vmatpush1.msra.mxu0 0.0
    %265 = vmatprep.mubr.f32.mxu0 0.0
    %266 = vmatmul.mubr.f32.gmra.mrb[0].mxu0 %v200
    %v267 = vpop.f32.mrb[0].mxu0
    %v268 = vadd.f32 %v193, %v267
    %v269 = vpop.f32.mrb[0].mxu0
    %270 = vdwg.mxu0
    %s271 = smul.f32 %s85, %s86
    %s272 = ssub.f32 %s86, 1.0
    %v273 = vstv %s272
    %v274 = vrcp.pop %v273
    %s275 = vtos %v274
    %v276 = vstv %s272
    %v277 = vrcp.pop %v276
    %s278 = vtos %v277
    %s279 = smul.f32 %s86, %s278
    %v280 = vsub.f32 0.0, %v268
    %v281 = vstv %s271
    %v282 = vsub.f32 %v280, %v281
    %v283 = vmax.f32 %v282, 0.0
    %v284 = vstv %s275
    %v285 = vmul.f32 %v284, %v283
    %v286 = vstv %s85
    %v287 = vsub.f32 %v280, %v286
    %v288 = vmax.f32 %v287, 0.0
    %v289 = vstv %s279
    %v290 = vmul.f32 %v289, %v288
    %v291 = vsub.f32 %v285, %v290
    %v292 = vsub.f32 %v268, %v286
    %v293 = vmax.f32 %v292, 0.0
    %v294 = vmul.f32 %v289, %v293
    %v295 = vadd.f32 %v291, %v294
    %v296 = vsub.f32 %v268, %v281
    %v297 = vmax.f32 %v296, 0.0
    %v298 = vmul.f32 %v284, %v297
    %v299 = vsub.f32 %v295, %v298
    %300 = vmatprep.subr.mxu0 0.0
    %301 = vmatpush1.msra.mxu0 %v104
    %302 = vmatprep.subr.mxu0 0.0
    %303 = vmatpush1.msra.mxu0 %v105
    %304 = vmatprep.subr.mxu0 0.0
    %305 = vmatpush1.msra.mxu0 %v106
    %306 = vmatprep.subr.mxu0 0.0
    %307 = vmatpush1.msra.mxu0 %v107
    %308 = vmatprep.subr.mxu0 0.0
    %309 = vmatpush1.msra.mxu0 %v108
    %310 = vmatprep.subr.mxu0 0.0
    %311 = vmatpush1.msra.mxu0 %v109
    %312 = vmatprep.subr.mxu0 0.0
    %313 = vmatpush1.msra.mxu0 %v110
    %314 = vmatprep.subr.mxu0 0.0
    %315 = vmatpush1.msra.mxu0 %v111
    %316 = vmatprep.subr.mxu0 0.0
    %317 = vmatpush1.msra.mxu0 %v112
    %318 = vmatprep.subr.mxu0 0.0
    %319 = vmatpush1.msra.mxu0 %v113
    %320 = vmatprep.subr.mxu0 0.0
    %321 = vmatpush1.msra.mxu0 %v114
    %322 = vmatprep.subr.mxu0 0.0
    %323 = vmatpush1.msra.mxu0 %v115
    %324 = vmatprep.subr.mxu0 0.0
    %325 = vmatpush1.msra.mxu0 %v116
    %326 = vmatprep.subr.mxu0 0.0
    %327 = vmatpush1.msra.mxu0 %v117
    %328 = vmatprep.subr.mxu0 0.0
    %329 = vmatpush1.msra.mxu0 %v118
    %330 = vmatprep.subr.mxu0 0.0
    %331 = vmatpush1.msra.mxu0 %v119
    %332 = vmatprep.subr.mxu0 0.0
    %333 = vmatpush1.msra.mxu0 0.0
    %334 = vmatprep.subr.mxu0 0.0
    %335 = vmatpush1.msra.mxu0 0.0
    %336 = vmatprep.subr.mxu0 0.0
    %337 = vmatpush1.msra.mxu0 0.0
    %338 = vmatprep.subr.mxu0 0.0
    %339 = vmatpush1.msra.mxu0 0.0
    %340 = vmatprep.subr.mxu0 0.0
    %341 = vmatpush1.msra.mxu0 0.0
    %342 = vmatprep.subr.mxu0 0.0
    %343 = vmatpush1.msra.mxu0 0.0
    %344 = vmatprep.subr.mxu0 0.0
    %345 = vmatpush1.msra.mxu0 0.0
    %346 = vmatprep.subr.mxu0 0.0
    %347 = vmatpush1.msra.mxu0 0.0
    %348 = vmatprep.subr.mxu0 0.0
    %349 = vmatpush1.msra.mxu0 0.0
    %350 = vmatprep.subr.mxu0 0.0
    %351 = vmatpush1.msra.mxu0 0.0
    %352 = vmatprep.subr.mxu0 0.0
    %353 = vmatpush1.msra.mxu0 0.0
    %354 = vmatprep.subr.mxu0 0.0
    %355 = vmatpush1.msra.mxu0 0.0
    %356 = vmatprep.subr.mxu0 0.0
    %357 = vmatpush1.msra.mxu0 0.0
    %358 = vmatprep.subr.mxu0 0.0
    %359 = vmatpush1.msra.mxu0 0.0
    %360 = vmatprep.subr.mxu0 0.0
    %361 = vmatpush1.msra.mxu0 0.0
    %362 = vmatprep.subr.mxu0 0.0
    %363 = vmatpush1.msra.mxu0 0.0
    %364 = vmatprep.mubr.f32.mxu0 0.0
    %365 = vmatmul.mubr.f32.gmra.mrb[0].mxu0 %v299
    %v366 = vpop.f32.mrb[0].mxu0
    %v367 = vadd.f32 0.0, %v366
    %v368 = vpop.f32.mrb[0].mxu0
    %369 = vdwg.mxu0
    %s370 = scalar_lea.vmem [#allocation12], 8
    %371 = vst [vmem:[%s370] sm:$0xff] %v367
    %s372 = sld [smem:[#allocation2 + $0x3]]
    %v373 = vstv %s372
    %v374 = vmul.f32 %v373, %v367
    %v375 = vadd.f32 %v367, %v374
    %376 = vmatprep.subr.mxu0 0.0
    %377 = vmatpush1.msra.mxu0 %v88
    %378 = vmatprep.subr.mxu0 0.0
    %379 = vmatpush1.msra.mxu0 %v89
    %380 = vmatprep.subr.mxu0 0.0
    %381 = vmatpush1.msra.mxu0 %v90
    %382 = vmatprep.subr.mxu0 0.0
    %383 = vmatpush1.msra.mxu0 %v91
    %384 = vmatprep.subr.mxu0 0.0
    %385 = vmatpush1.msra.mxu0 %v92
    %386 = vmatprep.subr.mxu0 0.0
    %387 = vmatpush1.msra.mxu0 %v93
    %388 = vmatprep.subr.mxu0 0.0
    %389 = vmatpush1.msra.mxu0 %v94
    %390 = vmatprep.subr.mxu0 0.0
    %391 = vmatpush1.msra.mxu0 %v95
    %392 = vmatprep.subr.mxu0 0.0
    %393 = vmatpush1.msra.mxu0 %v96
    %394 = vmatprep.subr.mxu0 0.0
    %395 = vmatpush1.msra.mxu0 %v97
    %396 = vmatprep.subr.mxu0 0.0
    %397 = vmatpush1.msra.mxu0 %v98
    %398 = vmatprep.subr.mxu0 0.0
    %399 = vmatpush1.msra.mxu0 %v99
    %400 = vmatprep.subr.mxu0 0.0
    %401 = vmatpush1.msra.mxu0 %v100
    %402 = vmatprep.subr.mxu0 0.0
    %403 = vmatpush1.msra.mxu0 %v101
    %404 = vmatprep.subr.mxu0 0.0
    %405 = vmatpush1.msra.mxu0 %v102
    %406 = vmatprep.subr.mxu0 0.0
    %407 = vmatpush1.msra.mxu0 %v103
    %408 = vmatprep.subr.mxu0 0.0
    %409 = vmatpush1.msra.mxu0 0.0
    %410 = vmatprep.subr.mxu0 0.0
    %411 = vmatpush1.msra.mxu0 0.0
    %412 = vmatprep.subr.mxu0 0.0
    %413 = vmatpush1.msra.mxu0 0.0
    %414 = vmatprep.subr.mxu0 0.0
    %415 = vmatpush1.msra.mxu0 0.0
    %416 = vmatprep.subr.mxu0 0.0
    %417 = vmatpush1.msra.mxu0 0.0
    %418 = vmatprep.subr.mxu0 0.0
    %419 = vmatpush1.msra.mxu0 0.0
    %420 = vmatprep.subr.mxu0 0.0
    %421 = vmatpush1.msra.mxu0 0.0
    %422 = vmatprep.subr.mxu0 0.0
    %423 = vmatpush1.msra.mxu0 0.0
    %424 = vmatprep.subr.mxu0 0.0
    %425 = vmatpush1.msra.mxu0 0.0
    %426 = vmatprep.subr.mxu0 0.0
    %427 = vmatpush1.msra.mxu0 0.0
    %428 = vmatprep.subr.mxu0 0.0
    %429 = vmatpush1.msra.mxu0 0.0
    %430 = vmatprep.subr.mxu0 0.0
    %431 = vmatpush1.msra.mxu0 0.0
    %432 = vmatprep.subr.mxu0 0.0
    %433 = vmatpush1.msra.mxu0 0.0
    %434 = vmatprep.subr.mxu0 0.0
    %435 = vmatpush1.msra.mxu0 0.0
    %436 = vmatprep.subr.mxu0 0.0
    %437 = vmatpush1.msra.mxu0 0.0
    %438 = vmatprep.subr.mxu0 0.0
    %439 = vmatpush1.msra.mxu0 0.0
    %440 = vmatprep.mubr.f32.mxu0 0.0
    %441 = vmatmul.mubr.f32.gmra.mrb[0].mxu0 %v375
    %v442 = vpop.f32.mrb[0].mxu0
    %v443 = vadd.f32 %v193, %v442
    %v444 = vpop.f32.mrb[0].mxu0
    %445 = vdwg.mxu0
    %v446 = vsub.f32 0.0, %v443
    %v447 = vsub.f32 %v446, %v281
    %v448 = vmax.f32 %v447, 0.0
    %v449 = vmul.f32 %v284, %v448
    %v450 = vsub.f32 %v446, %v286
    %v451 = vmax.f32 %v450, 0.0
    %v452 = vmul.f32 %v289, %v451
    %v453 = vsub.f32 %v449, %v452
    %v454 = vsub.f32 %v443, %v286
    %v455 = vmax.f32 %v454, 0.0
    %v456 = vmul.f32 %v289, %v455
    %v457 = vadd.f32 %v453, %v456
    %v458 = vsub.f32 %v443, %v281
    %v459 = vmax.f32 %v458, 0.0
    %v460 = vmul.f32 %v284, %v459
    %v461 = vsub.f32 %v457, %v460
    %462 = vmatprep.subr.mxu0 0.0
    %463 = vmatpush1.msra.mxu0 %v104
    %464 = vmatprep.subr.mxu0 0.0
    %465 = vmatpush1.msra.mxu0 %v105
    %466 = vmatprep.subr.mxu0 0.0
    %467 = vmatpush1.msra.mxu0 %v106
    %468 = vmatprep.subr.mxu0 0.0
    %469 = vmatpush1.msra.mxu0 %v107
    %470 = vmatprep.subr.mxu0 0.0
    %471 = vmatpush1.msra.mxu0 %v108
    %472 = vmatprep.subr.mxu0 0.0
    %473 = vmatpush1.msra.mxu0 %v109
    %474 = vmatprep.subr.mxu0 0.0
    %475 = vmatpush1.msra.mxu0 %v110
    %476 = vmatprep.subr.mxu0 0.0
    %477 = vmatpush1.msra.mxu0 %v111
    %478 = vmatprep.subr.mxu0 0.0
    %479 = vmatpush1.msra.mxu0 %v112
    %480 = vmatprep.subr.mxu0 0.0
    %481 = vmatpush1.msra.mxu0 %v113
    %482 = vmatprep.subr.mxu0 0.0
    %483 = vmatpush1.msra.mxu0 %v114
    %484 = vmatprep.subr.mxu0 0.0
    %485 = vmatpush1.msra.mxu0 %v115
    %486 = vmatprep.subr.mxu0 0.0
    %487 = vmatpush1.msra.mxu0 %v116
    %488 = vmatprep.subr.mxu0 0.0
    %489 = vmatpush1.msra.mxu0 %v117
    %490 = vmatprep.subr.mxu0 0.0
    %491 = vmatpush1.msra.mxu0 %v118
    %492 = vmatprep.subr.mxu0 0.0
    %493 = vmatpush1.msra.mxu0 %v119
    %494 = vmatprep.subr.mxu0 0.0
    %495 = vmatpush1.msra.mxu0 0.0
    %496 = vmatprep.subr.mxu0 0.0
    %497 = vmatpush1.msra.mxu0 0.0
    %498 = vmatprep.subr.mxu0 0.0
    %499 = vmatpush1.msra.mxu0 0.0
    %500 = vmatprep.subr.mxu0 0.0
    %501 = vmatpush1.msra.mxu0 0.0
    %502 = vmatprep.subr.mxu0 0.0
    %503 = vmatpush1.msra.mxu0 0.0
    %504 = vmatprep.subr.mxu0 0.0
    %505 = vmatpush1.msra.mxu0 0.0
    %506 = vmatprep.subr.mxu0 0.0
    %507 = vmatpush1.msra.mxu0 0.0
    %508 = vmatprep.subr.mxu0 0.0
    %509 = vmatpush1.msra.mxu0 0.0
    %510 = vmatprep.subr.mxu0 0.0
    %511 = vmatpush1.msra.mxu0 0.0
    %512 = vmatprep.subr.mxu0 0.0
    %513 = vmatpush1.msra.mxu0 0.0
    %514 = vmatprep.subr.mxu0 0.0
    %515 = vmatpush1.msra.mxu0 0.0
    %516 = vmatprep.subr.mxu0 0.0
    %517 = vmatpush1.msra.mxu0 0.0
    %518 = vmatprep.subr.mxu0 0.0
    %519 = vmatpush1.msra.mxu0 0.0
    %520 = vmatprep.subr.mxu0 0.0
    %521 = vmatpush1.msra.mxu0 0.0
    %522 = vmatprep.subr.mxu0 0.0
    %523 = vmatpush1.msra.mxu0 0.0
    %524 = vmatprep.subr.mxu0 0.0
    %525 = vmatpush1.msra.mxu0 0.0
    %526 = vmatprep.mubr.f32.mxu0 0.0
    %527 = vmatmul.mubr.f32.gmra.mrb[0].mxu0 %v461
    %v528 = vpop.f32.mrb[0].mxu0
    %v529 = vadd.f32 0.0, %v528
    %v530 = vpop.f32.mrb[0].mxu0
    %531 = vdwg.mxu0
    %s532 = scalar_lea.vmem [#allocation12], 16
    %533 = vst [vmem:[%s532] sm:$0xff] %v529
    %s534 = sld [smem:[#allocation2 + $0x4]]
    %v535 = vsub.f32 %v529, %v367
    %v536 = vstv %s534
    %v537 = vmul.f32 %v536, %v535
    %v538 = vadd.f32 %v529, %v537
    %539 = vmatprep.subr.mxu0 0.0
    %540 = vmatpush1.msra.mxu0 %v88
    %541 = vmatprep.subr.mxu0 0.0
    %542 = vmatpush1.msra.mxu0 %v89
    %543 = vmatprep.subr.mxu0 0.0
    %544 = vmatpush1.msra.mxu0 %v90
    %545 = vmatprep.subr.mxu0 0.0
    %546 = vmatpush1.msra.mxu0 %v91
    %547 = vmatprep.subr.mxu0 0.0
    %548 = vmatpush1.msra.mxu0 %v92
    %549 = vmatprep.subr.mxu0 0.0
    %550 = vmatpush1.msra.mxu0 %v93
    %551 = vmatprep.subr.mxu0 0.0
    %552 = vmatpush1.msra.mxu0 %v94
    %553 = vmatprep.subr.mxu0 0.0
    %554 = vmatpush1.msra.mxu0 %v95
    %555 = vmatprep.subr.mxu0 0.0
    %556 = vmatpush1.msra.mxu0 %v96
    %557 = vmatprep.subr.mxu0 0.0
    %558 = vmatpush1.msra.mxu0 %v97
    %559 = vmatprep.subr.mxu0 0.0
    %560 = vmatpush1.msra.mxu0 %v98
    %561 = vmatprep.subr.mxu0 0.0
    %562 = vmatpush1.msra.mxu0 %v99
    %563 = vmatprep.subr.mxu0 0.0
    %564 = vmatpush1.msra.mxu0 %v100
    %565 = vmatprep.subr.mxu0 0.0
    %566 = vmatpush1.msra.mxu0 %v101
    %567 = vmatprep.subr.mxu0 0.0
    %568 = vmatpush1.msra.mxu0 %v102
    %569 = vmatprep.subr.mxu0 0.0
    %570 = vmatpush1.msra.mxu0 %v103
    %571 = vmatprep.subr.mxu0 0.0
    %572 = vmatpush1.msra.mxu0 0.0
    %573 = vmatprep.subr.mxu0 0.0
    %574 = vmatpush1.msra.mxu0 0.0
    %575 = vmatprep.subr.mxu0 0.0
    %576 = vmatpush1.msra.mxu0 0.0
    %577 = vmatprep.subr.mxu0 0.0
    %578 = vmatpush1.msra.mxu0 0.0
    %579 = vmatprep.subr.mxu0 0.0
    %580 = vmatpush1.msra.mxu0 0.0
    %581 = vmatprep.subr.mxu0 0.0
    %582 = vmatpush1.msra.mxu0 0.0
    %583 = vmatprep.subr.mxu0 0.0
    %584 = vmatpush1.msra.mxu0 0.0
    %585 = vmatprep.subr.mxu0 0.0
    %586 = vmatpush1.msra.mxu0 0.0
    %587 = vmatprep.subr.mxu0 0.0
    %588 = vmatpush1.msra.mxu0 0.0
    %589 = vmatprep.subr.mxu0 0.0
    %590 = vmatpush1.msra.mxu0 0.0
    %591 = vmatprep.subr.mxu0 0.0
    %592 = vmatpush1.msra.mxu0 0.0
    %593 = vmatprep.subr.mxu0 0.0
    %594 = vmatpush1.msra.mxu0 0.0
    %595 = vmatprep.subr.mxu0 0.0
    %596 = vmatpush1.msra.mxu0 0.0
    %597 = vmatprep.subr.mxu0 0.0
    %598 = vmatpush1.msra.mxu0 0.0
    %599 = vmatprep.subr.mxu0 0.0
    %600 = vmatpush1.msra.mxu0 0.0
    %601 = vmatprep.subr.mxu0 0.0
    %602 = vmatpush1.msra.mxu0 0.0
    %603 = vmatprep.mubr.f32.mxu0 0.0
    %604 = vmatmul.mubr.f32.gmra.mrb[0].mxu0 %v538
    %v605 = vpop.f32.mrb[0].mxu0
    %v606 = vadd.f32 %v193, %v605
    %v607 = vpop.f32.mrb[0].mxu0
    %608 = vdwg.mxu0
    %v609 = vsub.f32 0.0, %v606
    %v610 = vsub.f32 %v609, %v281
    %v611 = vmax.f32 %v610, 0.0
    %v612 = vmul.f32 %v284, %v611
    %v613 = vsub.f32 %v609, %v286
    %v614 = vmax.f32 %v613, 0.0
    %v615 = vmul.f32 %v289, %v614
    %v616 = vsub.f32 %v612, %v615
    %v617 = vsub.f32 %v606, %v286
    %v618 = vmax.f32 %v617, 0.0
    %v619 = vmul.f32 %v289, %v618
    %v620 = vadd.f32 %v616, %v619
    %v621 = vsub.f32 %v606, %v281
    %v622 = vmax.f32 %v621, 0.0
    %v623 = vmul.f32 %v284, %v622
    %v624 = vsub.f32 %v620, %v623
    %625 = vmatprep.subr.mxu0 0.0
    %626 = vmatpush1.msra.mxu0 %v104
    %627 = vmatprep.subr.mxu0 0.0
    %628 = vmatpush1.msra.mxu0 %v105
    %629 = vmatprep.subr.mxu0 0.0
    %630 = vmatpush1.msra.mxu0 %v106
    %631 = vmatprep.subr.mxu0 0.0
    %632 = vmatpush1.msra.mxu0 %v107
    %633 = vmatprep.subr.mxu0 0.0
    %634 = vmatpush1.msra.mxu0 %v108
    %635 = vmatprep.subr.mxu0 0.0
    %636 = vmatpush1.msra.mxu0 %v109
    %637 = vmatprep.subr.mxu0 0.0
    %638 = vmatpush1.msra.mxu0 %v110
    %639 = vmatprep.subr.mxu0 0.0
    %640 = vmatpush1.msra.mxu0 %v111
    %641 = vmatprep.subr.mxu0 0.0
    %642 = vmatpush1.msra.mxu0 %v112
    %643 = vmatprep.subr.mxu0 0.0
    %644 = vmatpush1.msra.mxu0 %v113
    %645 = vmatprep.subr.mxu0 0.0
    %646 = vmatpush1.msra.mxu0 %v114
    %647 = vmatprep.subr.mxu0 0.0
    %648 = vmatpush1.msra.mxu0 %v115
    %649 = vmatprep.subr.mxu0 0.0
    %650 = vmatpush1.msra.mxu0 %v116
    %651 = vmatprep.subr.mxu0 0.0
    %652 = vmatpush1.msra.mxu0 %v117
    %653 = vmatprep.subr.mxu0 0.0
    %654 = vmatpush1.msra.mxu0 %v118
    %655 = vmatprep.subr.mxu0 0.0
    %656 = vmatpush1.msra.mxu0 %v119
    %657 = vmatprep.subr.mxu0 0.0
    %658 = vmatpush1.msra.mxu0 0.0
    %659 = vmatprep.subr.mxu0 0.0
    %660 = vmatpush1.msra.mxu0 0.0
    %661 = vmatprep.subr.mxu0 0.0
    %662 = vmatpush1.msra.mxu0 0.0
    %663 = vmatprep.subr.mxu0 0.0
    %664 = vmatpush1.msra.mxu0 0.0
    %665 = vmatprep.subr.mxu0 0.0
    %666 = vmatpush1.msra.mxu0 0.0
    %667 = vmatprep.subr.mxu0 0.0
    %668 = vmatpush1.msra.mxu0 0.0
    %669 = vmatprep.subr.mxu0 0.0
    %670 = vmatpush1.msra.mxu0 0.0
    %671 = vmatprep.subr.mxu0 0.0
    %672 = vmatpush1.msra.mxu0 0.0
    %673 = vmatprep.subr.mxu0 0.0
    %674 = vmatpush1.msra.mxu0 0.0
    %675 = vmatprep.subr.mxu0 0.0
    %676 = vmatpush1.msra.mxu0 0.0
    %677 = vmatprep.subr.mxu0 0.0
    %678 = vmatpush1.msra.mxu0 0.0
    %679 = vmatprep.subr.mxu0 0.0
    %680 = vmatpush1.msra.mxu0 0.0
    %681 = vmatprep.subr.mxu0 0.0
    %682 = vmatpush1.msra.mxu0 0.0
    %683 = vmatprep.subr.mxu0 0.0
    %684 = vmatpush1.msra.mxu0 0.0
    %685 = vmatprep.subr.mxu0 0.0
    %686 = vmatpush1.msra.mxu0 0.0
    %687 = vmatprep.subr.mxu0 0.0
    %688 = vmatpush1.msra.mxu0 0.0
    %689 = vmatprep.mubr.f32.mxu0 0.0
    %690 = vmatmul.mubr.f32.gmra.mrb[0].mxu0 %v624
    %v691 = vpop.f32.mrb[0].mxu0
    %v692 = vadd.f32 0.0, %v691
    %v693 = vpop.f32.mrb[0].mxu0
    %694 = vdwg.mxu0
    %s695 = scalar_lea.vmem [#allocation12], 24
    %696 = vst [vmem:[%s695] sm:$0xff] %v692
    %s697 = sld [smem:[#allocation2 + $0x5]]
    %v698 = vsub.f32 %v692, %v529
    %v699 = vstv %s697
    %v700 = vmul.f32 %v699, %v698
    %v701 = vadd.f32 %v692, %v700
    %702 = vmatprep.subr.mxu0 0.0
    %703 = vmatpush1.msra.mxu0 %v88
    %704 = vmatprep.subr.mxu0 0.0
    %705 = vmatpush1.msra.mxu0 %v89
    %706 = vmatprep.subr.mxu0 0.0
    %707 = vmatpush1.msra.mxu0 %v90
    %708 = vmatprep.subr.mxu0 0.0
    %709 = vmatpush1.msra.mxu0 %v91
    %710 = vmatprep.subr.mxu0 0.0
    %711 = vmatpush1.msra.mxu0 %v92
    %712 = vmatprep.subr.mxu0 0.0
    %713 = vmatpush1.msra.mxu0 %v93
    %714 = vmatprep.subr.mxu0 0.0
    %715 = vmatpush1.msra.mxu0 %v94
    %716 = vmatprep.subr.mxu0 0.0
    %717 = vmatpush1.msra.mxu0 %v95
    %718 = vmatprep.subr.mxu0 0.0
    %719 = vmatpush1.msra.mxu0 %v96
    %720 = vmatprep.subr.mxu0 0.0
    %721 = vmatpush1.msra.mxu0 %v97
    %722 = vmatprep.subr.mxu0 0.0
    %723 = vmatpush1.msra.mxu0 %v98
    %724 = vmatprep.subr.mxu0 0.0
    %725 = vmatpush1.msra.mxu0 %v99
    %726 = vmatprep.subr.mxu0 0.0
    %727 = vmatpush1.msra.mxu0 %v100
    %728 = vmatprep.subr.mxu0 0.0
    %729 = vmatpush1.msra.mxu0 %v101
    %730 = vmatprep.subr.mxu0 0.0
    %731 = vmatpush1.msra.mxu0 %v102
    %732 = vmatprep.subr.mxu0 0.0
    %733 = vmatpush1.msra.mxu0 %v103
    %734 = vmatprep.subr.mxu0 0.0
    %735 = vmatpush1.msra.mxu0 0.0
    %736 = vmatprep.subr.mxu0 0.0
    %737 = vmatpush1.msra.mxu0 0.0
    %738 = vmatprep.subr.mxu0 0.0
    %739 = vmatpush1.msra.mxu0 0.0
    %740 = vmatprep.subr.mxu0 0.0
    %741 = vmatpush1.msra.mxu0 0.0
    %742 = vmatprep.subr.mxu0 0.0
    %743 = vmatpush1.msra.mxu0 0.0
    %744 = vmatprep.subr.mxu0 0.0
    %745 = vmatpush1.msra.mxu0 0.0
    %746 = vmatprep.subr.mxu0 0.0
    %747 = vmatpush1.msra.mxu0 0.0
    %748 = vmatprep.subr.mxu0 0.0
    %749 = vmatpush1.msra.mxu0 0.0
    %750 = vmatprep.subr.mxu0 0.0
    %751 = vmatpush1.msra.mxu0 0.0
    %752 = vmatprep.subr.mxu0 0.0
    %753 = vmatpush1.msra.mxu0 0.0
    %754 = vmatprep.subr.mxu0 0.0
    %755 = vmatpush1.msra.mxu0 0.0
    %756 = vmatprep.subr.mxu0 0.0
    %757 = vmatpush1.msra.mxu0 0.0
    %758 = vmatprep.subr.mxu0 0.0
    %759 = vmatpush1.msra.mxu0 0.0
    %760 = vmatprep.subr.mxu0 0.0
    %761 = vmatpush1.msra.mxu0 0.0
    %762 = vmatprep.subr.mxu0 0.0
    %763 = vmatpush1.msra.mxu0 0.0
    %764 = vmatprep.subr.mxu0 0.0
    %765 = vmatpush1.msra.mxu0 0.0
    %766 = vmatprep.mubr.f32.mxu0 0.0
    %767 = vmatmul.mubr.f32.gmra.mrb[0].mxu0 %v701
    %v768 = vpop.f32.mrb[0].mxu0
    %v769 = vadd.f32 %v193, %v768
    %v770 = vpop.f32.mrb[0].mxu0
    %771 = vdwg.mxu0
    %v772 = vsub.f32 0.0, %v769
    %v773 = vsub.f32 %v772, %v281
    %v774 = vmax.f32 %v773, 0.0
    %v775 = vmul.f32 %v284, %v774
    %v776 = vsub.f32 %v772, %v286
    %v777 = vmax.f32 %v776, 0.0
    %v778 = vmul.f32 %v289, %v777
    %v779 = vsub.f32 %v775, %v778
    %v780 = vsub.f32 %v769, %v286
    %v781 = vmax.f32 %v780, 0.0
    %v782 = vmul.f32 %v289, %v781
    %v783 = vadd.f32 %v779, %v782
    %v784 = vsub.f32 %v769, %v281
    %v785 = vmax.f32 %v784, 0.0
    %v786 = vmul.f32 %v284, %v785
    %v787 = vsub.f32 %v783, %v786
    %788 = vmatprep.subr.mxu0 0.0
    %789 = vmatpush1.msra.mxu0 %v104
    %790 = vmatprep.subr.mxu0 0.0
    %791 = vmatpush1.msra.mxu0 %v105
    %792 = vmatprep.subr.mxu0 0.0
    %793 = vmatpush1.msra.mxu0 %v106
    %794 = vmatprep.subr.mxu0 0.0
    %795 = vmatpush1.msra.mxu0 %v107
    %796 = vmatprep.subr.mxu0 0.0
    %797 = vmatpush1.msra.mxu0 %v108
    %798 = vmatprep.subr.mxu0 0.0
    %799 = vmatpush1.msra.mxu0 %v109
    %800 = vmatprep.subr.mxu0 0.0
    %801 = vmatpush1.msra.mxu0 %v110
    %802 = vmatprep.subr.mxu0 0.0
    %803 = vmatpush1.msra.mxu0 %v111
    %804 = vmatprep.subr.mxu0 0.0
    %805 = vmatpush1.msra.mxu0 %v112
    %806 = vmatprep.subr.mxu0 0.0
    %807 = vmatpush1.msra.mxu0 %v113
    %808 = vmatprep.subr.mxu0 0.0
    %809 = vmatpush1.msra.mxu0 %v114
    %810 = vmatprep.subr.mxu0 0.0
    %811 = vmatpush1.msra.mxu0 %v115
    %812 = vmatprep.subr.mxu0 0.0
    %813 = vmatpush1.msra.mxu0 %v116
    %814 = vmatprep.subr.mxu0 0.0
    %815 = vmatpush1.msra.mxu0 %v117
    %816 = vmatprep.subr.mxu0 0.0
    %817 = vmatpush1.msra.mxu0 %v118
    %818 = vmatprep.subr.mxu0 0.0
    %819 = vmatpush1.msra.mxu0 %v119
    %820 = vmatprep.subr.mxu0 0.0
    %821 = vmatpush1.msra.mxu0 0.0
    %822 = vmatprep.subr.mxu0 0.0
    %823 = vmatpush1.msra.mxu0 0.0
    %824 = vmatprep.subr.mxu0 0.0
    %825 = vmatpush1.msra.mxu0 0.0
    %826 = vmatprep.subr.mxu0 0.0
    %827 = vmatpush1.msra.mxu0 0.0
    %828 = vmatprep.subr.mxu0 0.0
    %829 = vmatpush1.msra.mxu0 0.0
    %830 = vmatprep.subr.mxu0 0.0
    %831 = vmatpush1.msra.mxu0 0.0
    %832 = vmatprep.subr.mxu0 0.0
    %833 = vmatpush1.msra.mxu0 0.0
    %834 = vmatprep.subr.mxu0 0.0
    %835 = vmatpush1.msra.mxu0 0.0
    %836 = vmatprep.subr.mxu0 0.0
    %837 = vmatpush1.msra.mxu0 0.0
    %838 = vmatprep.subr.mxu0 0.0
    %839 = vmatpush1.msra.mxu0 0.0
    %840 = vmatprep.subr.mxu0 0.0
    %841 = vmatpush1.msra.mxu0 0.0
    %842 = vmatprep.subr.mxu0 0.0
    %843 = vmatpush1.msra.mxu0 0.0
    %844 = vmatprep.subr.mxu0 0.0
    %845 = vmatpush1.msra.mxu0 0.0
    %846 = vmatprep.subr.mxu0 0.0
    %847 = vmatpush1.msra.mxu0 0.0
    %848 = vmatprep.subr.mxu0 0.0
    %849 = vmatpush1.msra.mxu0 0.0
    %850 = vmatprep.subr.mxu0 0.0
    %851 = vmatpush1.msra.mxu0 0.0
    %852 = vmatprep.mubr.f32.mxu0 0.0
    %853 = vmatmul.mubr.f32.gmra.mrb[0].mxu0 %v787
    %v854 = vpop.f32.mrb[0].mxu0
    %v855 = vadd.f32 0.0, %v854
    %v856 = vpop.f32.mrb[0].mxu0
    %857 = vdwg.mxu0
    %s858 = scalar_lea.vmem [#allocation12], 32
    %859 = vst [vmem:[%s858] sm:$0xff] %v855
    %s860 = sld [smem:[#allocation2 + $0x6]]
    %v861 = vsub.f32 %v855, %v692
    %v862 = vstv %s860
    %v863 = vmul.f32 %v862, %v861
    %v864 = vadd.f32 %v855, %v863
    %865 = vmatprep.subr.mxu0 0.0
    %866 = vmatpush1.msra.mxu0 %v88
    %867 = vmatprep.subr.mxu0 0.0
    %868 = vmatpush1.msra.mxu0 %v89
    %869 = vmatprep.subr.mxu0 0.0
    %870 = vmatpush1.msra.mxu0 %v90
    %871 = vmatprep.subr.mxu0 0.0
    %872 = vmatpush1.msra.mxu0 %v91
    %873 = vmatprep.subr.mxu0 0.0
    %874 = vmatpush1.msra.mxu0 %v92
    %875 = vmatprep.subr.mxu0 0.0
    %876 = vmatpush1.msra.mxu0 %v93
    %877 = vmatprep.subr.mxu0 0.0
    %878 = vmatpush1.msra.mxu0 %v94
    %879 = vmatprep.subr.mxu0 0.0
    %880 = vmatpush1.msra.mxu0 %v95
    %881 = vmatprep.subr.mxu0 0.0
    %882 = vmatpush1.msra.mxu0 %v96
    %883 = vmatprep.subr.mxu0 0.0
    %884 = vmatpush1.msra.mxu0 %v97
    %885 = vmatprep.subr.mxu0 0.0
    %886 = vmatpush1.msra.mxu0 %v98
    %887 = vmatprep.subr.mxu0 0.0
    %888 = vmatpush1.msra.mxu0 %v99
    %889 = vmatprep.subr.mxu0 0.0
    %890 = vmatpush1.msra.mxu0 %v100
    %891 = vmatprep.subr.mxu0 0.0
    %892 = vmatpush1.msra.mxu0 %v101
    %893 = vmatprep.subr.mxu0 0.0
    %894 = vmatpush1.msra.mxu0 %v102
    %895 = vmatprep.subr.mxu0 0.0
    %896 = vmatpush1.msra.mxu0 %v103
    %897 = vmatprep.subr.mxu0 0.0
    %898 = vmatpush1.msra.mxu0 0.0
    %899 = vmatprep.subr.mxu0 0.0
    %900 = vmatpush1.msra.mxu0 0.0
    %901 = vmatprep.subr.mxu0 0.0
    %902 = vmatpush1.msra.mxu0 0.0
    %903 = vmatprep.subr.mxu0 0.0
    %904 = vmatpush1.msra.mxu0 0.0
    %905 = vmatprep.subr.mxu0 0.0
    %906 = vmatpush1.msra.mxu0 0.0
    %907 = vmatprep.subr.mxu0 0.0
    %908 = vmatpush1.msra.mxu0 0.0
    %909 = vmatprep.subr.mxu0 0.0
    %910 = vmatpush1.msra.mxu0 0.0
    %911 = vmatprep.subr.mxu0 0.0
    %912 = vmatpush1.msra.mxu0 0.0
    %913 = vmatprep.subr.mxu0 0.0
    %914 = vmatpush1.msra.mxu0 0.0
    %915 = vmatprep.subr.mxu0 0.0
    %916 = vmatpush1.msra.mxu0 0.0
    %917 = vmatprep.subr.mxu0 0.0
    %918 = vmatpush1.msra.mxu0 0.0
    %919 = vmatprep.subr.mxu0 0.0
    %920 = vmatpush1.msra.mxu0 0.0
    %921 = vmatprep.subr.mxu0 0.0
    %922 = vmatpush1.msra.mxu0 0.0
    %923 = vmatprep.subr.mxu0 0.0
    %924 = vmatpush1.msra.mxu0 0.0
    %925 = vmatprep.subr.mxu0 0.0
    %926 = vmatpush1.msra.mxu0 0.0
    %927 = vmatprep.subr.mxu0 0.0
    %928 = vmatpush1.msra.mxu0 0.0
    %929 = vmatprep.mubr.f32.mxu0 0.0
    %930 = vmatmul.mubr.f32.gmra.mrb[0].mxu0 %v864
    %v931 = vpop.f32.mrb[0].mxu0
    %v932 = vadd.f32 %v193, %v931
    %v933 = vpop.f32.mrb[0].mxu0
    %934 = vdwg.mxu0
    %v935 = vsub.f32 0.0, %v932
    %v936 = vsub.f32 %v935, %v281
    %v937 = vmax.f32 %v936, 0.0
    %v938 = vmul.f32 %v284, %v937
    %v939 = vsub.f32 %v935, %v286
    %v940 = vmax.f32 %v939, 0.0
    %v941 = vmul.f32 %v289, %v940
    %v942 = vsub.f32 %v938, %v941
    %v943 = vsub.f32 %v932, %v286
    %v944 = vmax.f32 %v943, 0.0
    %v945 = vmul.f32 %v289, %v944
    %v946 = vadd.f32 %v942, %v945
    %v947 = vsub.f32 %v932, %v281
    %v948 = vmax.f32 %v947, 0.0
    %v949 = vmul.f32 %v284, %v948
    %v950 = vsub.f32 %v946, %v949
    %951 = vmatprep.subr.mxu0 0.0
    %952 = vmatpush1.msra.mxu0 %v104
    %953 = vmatprep.subr.mxu0 0.0
    %954 = vmatpush1.msra.mxu0 %v105
    %955 = vmatprep.subr.mxu0 0.0
    %956 = vmatpush1.msra.mxu0 %v106
    %957 = vmatprep.subr.mxu0 0.0
    %958 = vmatpush1.msra.mxu0 %v107
    %959 = vmatprep.subr.mxu0 0.0
    %960 = vmatpush1.msra.mxu0 %v108
    %961 = vmatprep.subr.mxu0 0.0
    %962 = vmatpush1.msra.mxu0 %v109
    %963 = vmatprep.subr.mxu0 0.0
    %964 = vmatpush1.msra.mxu0 %v110
    %965 = vmatprep.subr.mxu0 0.0
    %966 = vmatpush1.msra.mxu0 %v111
    %967 = vmatprep.subr.mxu0 0.0
    %968 = vmatpush1.msra.mxu0 %v112
    %969 = vmatprep.subr.mxu0 0.0
    %970 = vmatpush1.msra.mxu0 %v113
    %971 = vmatprep.subr.mxu0 0.0
    %972 = vmatpush1.msra.mxu0 %v114
    %973 = vmatprep.subr.mxu0 0.0
    %974 = vmatpush1.msra.mxu0 %v115
    %975 = vmatprep.subr.mxu0 0.0
    %976 = vmatpush1.msra.mxu0 %v116
    %977 = vmatprep.subr.mxu0 0.0
    %978 = vmatpush1.msra.mxu0 %v117
    %979 = vmatprep.subr.mxu0 0.0
    %980 = vmatpush1.msra.mxu0 %v118
    %981 = vmatprep.subr.mxu0 0.0
    %982 = vmatpush1.msra.mxu0 %v119
    %983 = vmatprep.subr.mxu0 0.0
    %984 = vmatpush1.msra.mxu0 0.0
    %985 = vmatprep.subr.mxu0 0.0
    %986 = vmatpush1.msra.mxu0 0.0
    %987 = vmatprep.subr.mxu0 0.0
    %988 = vmatpush1.msra.mxu0 0.0
    %989 = vmatprep.subr.mxu0 0.0
    %990 = vmatpush1.msra.mxu0 0.0
    %991 = vmatprep.subr.mxu0 0.0
    %992 = vmatpush1.msra.mxu0 0.0
    %993 = vmatprep.subr.mxu0 0.0
    %994 = vmatpush1.msra.mxu0 0.0
    %995 = vmatprep.subr.mxu0 0.0
    %996 = vmatpush1.msra.mxu0 0.0
    %997 = vmatprep.subr.mxu0 0.0
    %998 = vmatpush1.msra.mxu0 0.0
    %999 = vmatprep.subr.mxu0 0.0
    %1000 = vmatpush1.msra.mxu0 0.0
    %1001 = vmatprep.subr.mxu0 0.0
    %1002 = vmatpush1.msra.mxu0 0.0
    %1003 = vmatprep.subr.mxu0 0.0
    %1004 = vmatpush1.msra.mxu0 0.0
    %1005 = vmatprep.subr.mxu0 0.0
    %1006 = vmatpush1.msra.mxu0 0.0
    %1007 = vmatprep.subr.mxu0 0.0
    %1008 = vmatpush1.msra.mxu0 0.0
    %1009 = vmatprep.subr.mxu0 0.0
    %1010 = vmatpush1.msra.mxu0 0.0
    %1011 = vmatprep.subr.mxu0 0.0
    %1012 = vmatpush1.msra.mxu0 0.0
    %1013 = vmatprep.subr.mxu0 0.0
    %1014 = vmatpush1.msra.mxu0 0.0
    %1015 = vmatprep.mubr.f32.mxu0 0.0
    %1016 = vmatmul.mubr.f32.gmra.mrb[0].mxu0 %v950
    %v1017 = vpop.f32.mrb[0].mxu0
    %v1018 = vadd.f32 0.0, %v1017
    %v1019 = vpop.f32.mrb[0].mxu0
    %1020 = vdwg.mxu0
    %s1021 = scalar_lea.vmem [#allocation12], 40
    %1022 = vst [vmem:[%s1021] sm:$0xff] %v1018
    // Predicated region
    $region42: #{tpu_custom_call.1} parent=1 // pred_check
      _
    $region43: #{tpu_custom_call.1} parent=1 // pred_check_branch
      %1024 = sbr.rel (0) target = $region45
    $region44: #{tpu_custom_call.1} parent=1 // pred_region
      %s1026 = ssub.s32 768, 768
      %1027 = vsyncadd [#allocation4], %s1026
      %s1028 = sshll.u32 [#allocation12], 4
      %s1029 = int_to_ptr.vmem [resolvable:$true] %s1028
      %1034 = dma.vmem_to_hbm [thread:$0]  %s1029, 768, %s5, [#allocation4], 128, 128, 8
    $region45: #{tpu_custom_call.1} parent=1 // pred_fallthru
      _
    // Predicated region
    $region46: #{tpu_custom_call.1} parent=1 // pred_check
      _
    $region47: #{tpu_custom_call.1} parent=1 // pred_check_branch
      %1036 = sbr.rel (0) target = $region49
    $region48: #{tpu_custom_call.1} parent=1 // pred_region
      %1037 = dma.done [#allocation4], 768
    $region49: #{tpu_custom_call.1} parent=1 // pred_fallthru
      _
    %1038 = vsyncpa [#allocation3], 1
    %1039 = vsyncpa [#allocation8], 1
    %1040 = vsyncpa [#allocation11], 1
    %1041 = vsyncpa [#allocation4], 1
    %1042 = vsyncpa [#allocation5], 1

</llo_original>
